<compile_context>
chip_gen: v7x
topology: tpu7x:2x2x1
jax: 0.10.0
libtpu: 0.0.40
codegen_flags: <defaults>
</compile_context>

<pallas_src>
import functools

import jax
import jax.numpy as jnp
from jax import lax
from jax.experimental import pallas as pl
from jax.experimental.pallas import tpu as pltpu


def _make_kernel(Nb, C, H, W, Cout, k, p):
    """Fused depthwise+pointwise kernel for static shapes (one batch block)."""
    Hp, Wp = H + 2 * p, W + 2 * p
    Hdw, Wdw = Hp - k + 1, Wp - k + 1      # depthwise output ("valid" on padded)
    Mdw = Hdw * Wdw

    def kernel(x_ref, w_ref, out_ref, xpad_ref):
        # x_ref   : (Nb, C, H, W)      NCHW input block (no host transpose)
        # w_ref   : (Cout, k*k*C)      fused depthwise*pointwise weights (transposed)
        # out_ref : (Nb, Cout, Mdw)    lane-dense output slab (== flattened NCHW)
        # xpad_ref: (Nb, C, Hp, Wp)    VMEM scratch holding zero-padded input

        # Zero-pad in VMEM (cheap, VMEM-only) -- saves a full HBM pad pass on
        # the host.  Re-initialize every step: with a "parallel" grid axis each
        # core has its own scratch, so gating the memset on program_id is unsafe.
        if p:
            xpad_ref[...] = jnp.zeros_like(xpad_ref)
        xpad_ref[:, :, p:p + H, p:p + W] = x_ref[...].astype(jnp.float32)

        w = w_ref[...]                                       # (Cout, k*k*C)

        for n in range(Nb):                                  # static, small
            xp = xpad_ref[n]                                 # (C, Hp, Wp)
            # Transposed im2col: rows ordered (tap-major, channel-minor) to
            # match the fused weight's column order.
            cols = [xp[:, i:i + Hdw, j:j + Wdw]
                    for i in range(k) for j in range(k)]
            a_t = jnp.concatenate(cols, axis=0).reshape(k * k * C, Mdw)
            # One MXU matmul does depthwise + pointwise at once (f32 acc); the
            # result is already (channel, flat-spatial) == NCHW order.
            yt = jnp.dot(w, a_t, preferred_element_type=jnp.float32)
            out_ref[n] = yt.astype(out_ref.dtype)

    return kernel


def _pick_batch_block(N, per_image_bytes, budget_bytes=8 << 20):
    """Largest divisor of N within a modest VMEM budget, keeping >=2 grid steps
    when possible so the 'parallel' batch axis can still megacore-shard."""
    nb = max(1, int(budget_bytes // max(per_image_bytes, 1)))
    if N >= 2:
        nb = min(nb, N // 2)
    nb = max(1, min(N, nb))
    while N % nb:
        nb -= 1
    return nb


@functools.partial(jax.jit, static_argnums=(3,))
def separable_conv2d(x_nchw, dw_weight, pw_weight, padding):
    """x_nchw: (N, C, H, W); dw_weight: (C, 1, k, k); pw_weight: (Cout, C, 1, 1)."""
    N, C, H, W = x_nchw.shape
    k = dw_weight.shape[-1]
    Cout = pw_weight.shape[0]
    p = int(padding)
    Hp, Wp = H + 2 * p, W + 2 * p
    Hdw, Wdw = Hp - k + 1, Wp - k + 1
    Mdw = Hdw * Wdw

    # Fuse depthwise and pointwise weights (transposed so the matmul output is
    # already channel-major): W_T[co, (i*k + j)*C + c] = dw[c, i, j] * pw[co, c].
    dw_kkc = jnp.transpose(dw_weight[:, 0, :, :], (1, 2, 0))        # (k, k, C)
    pw_oc = pw_weight[:, :, 0, 0]                                   # (Cout, C)
    w_fused_t = (pw_oc[:, None, None, :].astype(jnp.float32)
                 * dw_kkc[None].astype(jnp.float32)).reshape(Cout, k * k * C)

    # Fold a few batch images per grid step to amortize the ~0.35us per-step
    # overhead while keeping blocks small.
    per_image = 4 * (C * H * W + C * Hp * Wp            # input block + pad scratch
                     + (k * k * C + Cout) * Mdw)        # im2col operand + output
    Nb = _pick_batch_block(N, per_image)
    grid = N // Nb

    kernel = _make_kernel(Nb, C, H, W, Cout, k, p)

    # Raise the scoped-VMEM limit (16 MiB default on v5e) but stay <= 48 MiB so
    # double-buffered blocks also fit v7x's 64 MiB physical VMEM.
    vmem_limit = int(min(48 * 1024 * 1024,
                         max(32 * 1024 * 1024, 8 * Nb * per_image)))

    out3d = pl.pallas_call(
        kernel,
        out_shape=jax.ShapeDtypeStruct((N, Cout, Mdw), jnp.float32),
        grid_spec=pltpu.PrefetchScalarGridSpec(
            num_scalar_prefetch=0,
            grid=(grid,),
            in_specs=[
                pl.BlockSpec((Nb, C, H, W), lambda b: (b, 0, 0, 0)),
                pl.BlockSpec((Cout, k * k * C), lambda b: (0, 0)),
            ],
            out_specs=pl.BlockSpec((Nb, Cout, Mdw), lambda b: (b, 0, 0)),
            scratch_shapes=[pltpu.VMEM((Nb, C, Hp, Wp), jnp.float32)],
        ),
        compiler_params=pltpu.CompilerParams(
            dimension_semantics=("parallel",),
            vmem_limit_bytes=vmem_limit,
        ),
    )(x_nchw, w_fused_t)

    # (N, Cout, Hdw*Wdw) is exactly flattened NCHW of the interior -> free
    # reshape.  The 1x1 conv's padding=p adds a zero border (bias=False ->
    # exact zeros), added here on the small output tensor.
    y = out3d.reshape(N, Cout, Hdw, Wdw)
    if p:
        y = jnp.pad(y, ((0, 0), (0, 0), (p, p), (p, p)))
    return y


def _reference(x_nchw, dw_weight, pw_weight, padding):
    """Pure-JAX reference mirroring the PyTorch module."""
    C = x_nchw.shape[1]
    p = padding
    y = lax.conv_general_dilated(
        x_nchw, dw_weight, window_strides=(1, 1), padding=[(p, p), (p, p)],
        feature_group_count=C, dimension_numbers=("NCHW", "OIHW", "NCHW"))
    out = lax.conv_general_dilated(
        y, pw_weight, window_strides=(1, 1), padding=[(p, p), (p, p)],
        dimension_numbers=("NCHW", "OIHW", "NCHW"))
    return out


if __name__ == "__main__":
    # Small shapes consistent with the module.
    N, C, H, W = 2, 4, 16, 16
    Cout, k, padding = 8, 3, 1

    key = jax.random.PRNGKey(0)
    kx, kdw, kpw = jax.random.split(key, 3)
    x = jax.random.normal(kx, (N, C, H, W), jnp.float32)
    # nn.Conv2d weight shapes: depthwise (C, 1, k, k); pointwise (Cout, C, 1, 1)
    dw_weight = jax.random.normal(kdw, (C, 1, k, k), jnp.float32) * 0.1
    pw_weight = jax.random.normal(kpw, (Cout, C, 1, 1), jnp.float32) * 0.1

    out = jax.block_until_ready(separable_conv2d(x, dw_weight, pw_weight, padding))
    ref = jax.block_until_ready(_reference(x, dw_weight, pw_weight, padding))

    assert out.shape == ref.shape, (out.shape, ref.shape)
    assert jnp.allclose(out, ref, atol=1e-4, rtol=1e-4), "mismatch vs reference"
    print("KERNEL_OK")
</pallas_src>

<mosaic_0001>
module attributes {stable_mosaic.version = 11 : i64} {
  func.func @kernel(%arg0: i32, %arg1: memref<1x4x16x16xf32, #tpu.memory_space<vmem>>, %arg2: memref<8x36xf32, #tpu.memory_space<vmem>>, %arg3: memref<1x8x256xf32, #tpu.memory_space<vmem>>, %arg4: memref<1x4x18x18xf32, #tpu.memory_space<vmem>>) attributes {dimension_semantics = [#tpu.dimension_semantics<parallel>], iteration_bounds = array<i64: 2>, scalar_prefetch = 0 : i64, scratch_operands = 1 : i64, tpu.core_type = #tpu.core_type<tc>, window_params = [{transform_indices = @transform_0, window_bounds = array<i64: 1, 4, 16, 16>}, {pipeline_mode = #tpu.pipeline_mode<synchronous>, transform_indices = @transform_1, window_bounds = array<i64: 8, 36>}, {transform_indices = @transform_2, window_bounds = array<i64: 1, 8, 256>}]} {
    %cst = arith.constant 0.000000e+00 : f32
    %0 = vector.broadcast %cst : f32 to vector<1x4x18x18xf32>
    %c0 = arith.constant 0 : index
    %c0_0 = arith.constant 0 : index
    %c0_1 = arith.constant 0 : index
    %c0_2 = arith.constant 0 : index
    %1 = vector.load %arg4[%c0, %c0_0, %c0_1, %c0_2] : memref<1x4x18x18xf32, #tpu.memory_space<vmem>>, vector<1x4x18x18xf32>
    tpu.vector_store %arg4[%c0, %c0_0, %c0_1, %c0_2], %0 {strides = array<i32>} : memref<1x4x18x18xf32, #tpu.memory_space<vmem>>, vector<1x4x18x18xf32>,
    %c0_3 = arith.constant 0 : index
    %c0_4 = arith.constant 0 : index
    %c0_5 = arith.constant 0 : index
    %c0_6 = arith.constant 0 : index
    %2 = vector.load %arg1[%c0_3, %c0_4, %c0_5, %c0_6] : memref<1x4x16x16xf32, #tpu.memory_space<vmem>>, vector<1x4x16x16xf32>
    %c0_7 = arith.constant 0 : index
    %c0_8 = arith.constant 0 : index
    %c1 = arith.constant 1 : index
    %c1_9 = arith.constant 1 : index
    %3 = vector.load %arg4[%c0_7, %c0_8, %c1, %c1_9] : memref<1x4x18x18xf32, #tpu.memory_space<vmem>>, vector<1x4x16x16xf32>
    tpu.vector_store %arg4[%c0_7, %c0_8, %c1, %c1_9], %2 {strides = array<i32>} : memref<1x4x18x18xf32, #tpu.memory_space<vmem>>, vector<1x4x16x16xf32>,
    %c0_10 = arith.constant 0 : index
    %c0_11 = arith.constant 0 : index
    %4 = vector.load %arg2[%c0_10, %c0_11] : memref<8x36xf32, #tpu.memory_space<vmem>>, vector<8x36xf32>
    %c0_12 = arith.constant 0 : index
    %c0_13 = arith.constant 0 : index
    %c0_14 = arith.constant 0 : index
    %c0_15 = arith.constant 0 : index
    %5 = vector.load %arg4[%c0_12, %c0_13, %c0_14, %c0_15] : memref<1x4x18x18xf32, #tpu.memory_space<vmem>>, vector<1x4x18x18xf32>
    %6 = vector.shape_cast %5 : vector<1x4x18x18xf32> to vector<4x18x18xf32>
    %7 = vector.extract_strided_slice %6 {offsets = [0, 0, 0], sizes = [4, 16, 16], strides = [1, 1, 1]} : vector<4x18x18xf32> to vector<4x16x16xf32>
    %8 = vector.extract_strided_slice %6 {offsets = [0, 0, 1], sizes = [4, 16, 16], strides = [1, 1, 1]} : vector<4x18x18xf32> to vector<4x16x16xf32>
    %9 = vector.extract_strided_slice %6 {offsets = [0, 0, 2], sizes = [4, 16, 16], strides = [1, 1, 1]} : vector<4x18x18xf32> to vector<4x16x16xf32>
    %10 = vector.extract_strided_slice %6 {offsets = [0, 1, 0], sizes = [4, 16, 16], strides = [1, 1, 1]} : vector<4x18x18xf32> to vector<4x16x16xf32>
    %11 = vector.extract_strided_slice %6 {offsets = [0, 1, 1], sizes = [4, 16, 16], strides = [1, 1, 1]} : vector<4x18x18xf32> to vector<4x16x16xf32>
    %12 = vector.extract_strided_slice %6 {offsets = [0, 1, 2], sizes = [4, 16, 16], strides = [1, 1, 1]} : vector<4x18x18xf32> to vector<4x16x16xf32>
    %13 = vector.extract_strided_slice %6 {offsets = [0, 2, 0], sizes = [4, 16, 16], strides = [1, 1, 1]} : vector<4x18x18xf32> to vector<4x16x16xf32>
    %14 = vector.extract_strided_slice %6 {offsets = [0, 2, 1], sizes = [4, 16, 16], strides = [1, 1, 1]} : vector<4x18x18xf32> to vector<4x16x16xf32>
    %15 = vector.extract_strided_slice %6 {offsets = [0, 2, 2], sizes = [4, 16, 16], strides = [1, 1, 1]} : vector<4x18x18xf32> to vector<4x16x16xf32>
    %16 = tpu.concatenate %7, %8, %9, %10, %11, %12, %13, %14, %15 in 0 : vector<4x16x16xf32>, vector<4x16x16xf32>, vector<4x16x16xf32>, vector<4x16x16xf32>, vector<4x16x16xf32>, vector<4x16x16xf32>, vector<4x16x16xf32>, vector<4x16x16xf32>, vector<4x16x16xf32> -> vector<36x16x16xf32>
    %17 = vector.shape_cast %16 : vector<36x16x16xf32> to vector<36x256xf32>
    %cst_16 = arith.constant dense<0.000000e+00> : vector<8x256xf32>
    %18 = tpu.matmul %4, %17, %cst_16 {dimension_numbers = #tpu.dot_dimension_numbers<[1], [0], [0], [1], [0, 0, 1, 1], [], []>} : vector<8x36xf32>, vector<36x256xf32>, vector<8x256xf32> -> vector<8x256xf32>
    %c0_17 = arith.constant 0 : index
    %c0_18 = arith.constant 0 : index
    %c0_19 = arith.constant 0 : index
    %19 = vector.load %arg3[%c0_17, %c0_18, %c0_19] : memref<1x8x256xf32, #tpu.memory_space<vmem>>, vector<1x8x256xf32>
    %20 = vector.shape_cast %19 : vector<1x8x256xf32> to vector<8x256xf32>
    %21 = vector.shape_cast %18 : vector<8x256xf32> to vector<1x8x256xf32>
    tpu.vector_store %arg3[%c0_17, %c0_18, %c0_19], %21 {strides = array<i32>} : memref<1x8x256xf32, #tpu.memory_space<vmem>>, vector<1x8x256xf32>,
    return
  }
  func.func @transform_0(%arg0: i32) -> (i32, i32, i32, i32) {
    %c0_i32 = arith.constant 0 : i32
    %c0_i32_0 = arith.constant 0 : i32
    %c0_i32_1 = arith.constant 0 : i32
    %c0_i32_2 = arith.constant 0 : i32
    return %arg0, %c0_i32, %c0_i32_0, %c0_i32_1 : i32, i32, i32, i32
  }
  func.func @transform_1(%arg0: i32) -> (i32, i32) {
    %c0_i32 = arith.constant 0 : i32
    %c0_i32_0 = arith.constant 0 : i32
    %c0_i32_1 = arith.constant 0 : i32
    return %c0_i32, %c0_i32_0 : i32, i32
  }
  func.func @transform_2(%arg0: i32) -> (i32, i32, i32) {
    %c0_i32 = arith.constant 0 : i32
    %c0_i32_0 = arith.constant 0 : i32
    %c0_i32_1 = arith.constant 0 : i32
    return %arg0, %c0_i32, %c0_i32_0 : i32, i32, i32
  }
}

</mosaic_0001>

<llo_original>
// kernel: separable_conv2d.1
$region0: #{separable_conv2d.1}
  #allocation0 [shape = 'u32[]', space=smem, size = 0x4, offset = 0x4, fixed_abs, tag = 'smem constant byte address 0x4 - core index']
  #allocation1 [shape = 'u32[144,128]{1,0:T(1,128)}', space=vmem, size = 0x12000, scoped, tag = 'internal scratch']
  #allocation2 [shape = 'f32[1,4,18,18]{3,2,1,0:T(8,128)}', space=vmem, size = 0xc000, scoped, tag = 'scratch operand']
  %s0 = inlined_call_operand.vmem [shape: f32[2,4,16,16], index: 0, kind: input, shape index: {}]
  %s1 = inlined_call_operand.vmem [shape: f32[8,36], index: 1, kind: input, shape index: {}]
  %s2 = inlined_call_operand.vmem [shape: f32[2,8,256], index: 2, kind: output, shape index: {}]
  %s3 = sld [smem:[#allocation0]]
  $region41: #{separable_conv2d.1} parent=0
    _
  %s5 = ssub.s32 1, %s3
  %s6 = scalar_select 0, %s5, %s3
  loop: start=0, step=1, limit=4
  $region2: #{separable_conv2d.1} parent=0 // loop_pre_header
    _
  $region3: #{separable_conv2d.1} parent=0 // loop_header
    %s8 = sphi 0, %s12
    %p9 = scmp.ge.s32.totalorder %s8, 4
    %s18 = sphi 0, %s20
    %s21 = sphi 0, %s18
    %s22 = sphi 0, %s21
    %s38 = sphi 0, %s22
    %s42 = sphi 0, %s42
    %s44 = sphi 0, %s42
    %s45 = sphi 0, %s44
    %s59 = sphi 0, %s45
    %s65 = sphi 0, %s67
    %s68 = sphi 0, %s65
    %s69 = sphi 0, %s68
    %s85 = sphi 0, %s69
  $region4: #{separable_conv2d.1} parent=0 // loop_header_branch
    %11 = sbr.rel (%p9) target = $region8
  $region5: #{separable_conv2d.1} parent=0 // loop_body
    %s13 = ssub.s32 %s8, 1
    %s14 = ssub.s32 %s8, 2
    %s15 = sadd.s32 %s8, 1
    %s16 = ssub.s32 %s8, %s15
    %p17 = scmp.eq.s32.totalorder %s16, 0
    %s19 = sadd.s32 %s18, 1
    %s20 = scalar_select %p17, %s18, %s19
    %p23 = pneg %p17
    %p24 = scmp.eq.s32.totalorder %s8, 1
    %p25 = por %p23, %p24
    %p26 = scmp.ne.s32.totalorder %s18, %s21
    %p27 = scmp.eq.s32.totalorder %s8, 0
    %p28 = por %p26, %p27
    %p29 = scmp.ne.s32.totalorder %s18, %s21
    %p30 = scmp.eq.s32.totalorder %s13, 1
    %p31 = por %p29, %p30
    %p32 = scmp.ne.s32.totalorder %s21, %s22
    %p33 = scmp.eq.s32.totalorder %s13, 0
    %p34 = por %p32, %p33
    %p35 = scmp.ne.s32.totalorder %s21, %s22
    %p36 = scmp.eq.s32.totalorder %s14, 1
    %p37 = por %p35, %p36
    %p39 = scmp.ne.s32.totalorder %s22, %s38
    %p40 = scmp.eq.s32.totalorder %s14, 0
    %p41 = por %p39, %p40
    %s43 = sadd.s32 %s42, 1
    %p46 = scmp.eq.s32.totalorder %s8, 1
    %p47 = scmp.ne.s32.totalorder %s42, %s44
    %p48 = scmp.eq.s32.totalorder %s8, 0
    %p49 = por %p47, %p48
    %p50 = scmp.ne.s32.totalorder %s42, %s44
    %p51 = scmp.eq.s32.totalorder %s13, 1
    %p52 = por %p50, %p51
    %p53 = scmp.ne.s32.totalorder %s44, %s45
    %p54 = scmp.eq.s32.totalorder %s13, 0
    %p55 = por %p53, %p54
    %p56 = scmp.ne.s32.totalorder %s44, %s45
    %p57 = scmp.eq.s32.totalorder %s14, 1
    %p58 = por %p56, %p57
    %p60 = scmp.ne.s32.totalorder %s45, %s59
    %p61 = scmp.eq.s32.totalorder %s14, 0
    %p62 = por %p60, %p61
    %s63 = ssub.s32 %s8, %s15
    %p64 = scmp.eq.s32.totalorder %s63, 0
    %s66 = sadd.s32 %s65, 1
    %s67 = scalar_select %p64, %s65, %s66
    %p70 = pneg %p64
    %p71 = scmp.eq.s32.totalorder %s8, 1
    %p72 = por %p70, %p71
    %p73 = scmp.ne.s32.totalorder %s65, %s68
    %p74 = scmp.eq.s32.totalorder %s8, 0
    %p75 = por %p73, %p74
    %p76 = scmp.ne.s32.totalorder %s65, %s68
    %p77 = scmp.eq.s32.totalorder %s13, 1
    %p78 = por %p76, %p77
    %p79 = scmp.ne.s32.totalorder %s68, %s69
    %p80 = scmp.eq.s32.totalorder %s13, 0
    %p81 = por %p79, %p80
    %p82 = scmp.ne.s32.totalorder %s68, %s69
    %p83 = scmp.eq.s32.totalorder %s14, 1
    %p84 = por %p82, %p83
    %p86 = scmp.ne.s32.totalorder %s69, %s85
    %p87 = scmp.eq.s32.totalorder %s14, 0
    %p88 = por %p86, %p87
    %p89 = scmp.le.s32.totalorder 1, %s8
    %p90 = scmp.lt.s32.totalorder %s8, 3
    %p91 = pnand %p89, %p90
    %p92 = pneg %p91
    // Predicated region
    $region9: #{separable_conv2d.1} parent=5 // pred_check
      _
    $region10: #{separable_conv2d.1} parent=5 // pred_check_branch
      %94 = sbr.rel (%p91) target = $region12
    $region11: #{separable_conv2d.1} parent=5 // pred_region
      %s95 = ssub.s32 %s8, 1
      // Predicated region
      $region13: #{separable_conv2d.1} parent=11 // pred_check
        %p96 = pneg %p55
      $region14: #{separable_conv2d.1} parent=11 // pred_check_branch
        %98 = sbr.rel (%p96) target = $region16
      $region15: #{separable_conv2d.1} parent=11 // pred_region
        _
      $region16: #{separable_conv2d.1} parent=11 // pred_fallthru
        _
    $region12: #{separable_conv2d.1} parent=5 // pred_fallthru
      _
    %p99 = scmp.lt.s32.totalorder %s8, 2
    // Predicated region
    $region17: #{separable_conv2d.1} parent=5 // pred_check
      %p100 = pneg %p99
    $region18: #{separable_conv2d.1} parent=5 // pred_check_branch
      %102 = sbr.rel (%p100) target = $region20
    $region19: #{separable_conv2d.1} parent=5 // pred_region
      // Predicated region
      $region21: #{separable_conv2d.1} parent=19 // pred_check
        %p103 = pneg %p28
      $region22: #{separable_conv2d.1} parent=19 // pred_check_branch
        %105 = sbr.rel (%p103) target = $region24
      $region23: #{separable_conv2d.1} parent=19 // pred_region
        %p106 = scmp.lt.s32.totalorder %s8, 1
        %s107 = scalar_select %p106, %s8, 1
        %s108 = smul.addr %s107, 8
        %s109 = smul.addr %s108, 8
        %s110 = scalar_lea.vmem %s0, %s109
      $region24: #{separable_conv2d.1} parent=19 // pred_fallthru
        _
    $region20: #{separable_conv2d.1} parent=5 // pred_fallthru
      _
    %p111 = scmp.le.s32.totalorder 1, %s8
    %p112 = scmp.lt.s32.totalorder %s8, 3
    %p113 = pnand %p111, %p112
    %p114 = pneg %p113
    // Predicated region
    $region25: #{separable_conv2d.1} parent=5 // pred_check
      _
    $region26: #{separable_conv2d.1} parent=5 // pred_check_branch
      %116 = sbr.rel (%p113) target = $region28
    $region27: #{separable_conv2d.1} parent=5 // pred_region
      %s117 = ssub.s32 %s8, 1
      %p118 = scmp.lt.s32.totalorder %s13, 1
      %s119 = scalar_select %p118, %s13, 1
      %s120 = smul.addr %s119, 8
      %s121 = smul.addr %s120, 8
      %s122 = scalar_lea.vmem %s0, %s121
      %p123 = pneg %p34
      %p124 = pneg %p31
      %p125 = pneg %p55
      %p126 = pneg %p52
      %p127 = pneg %p81
      %p128 = pneg %p78
      %p129 = scmp.lt.s32.totalorder %s13, 1
      %s130 = scalar_select %p129, %s13, 1
      %s131 = smul.addr %s130, 2
      %s132 = smul.addr %s131, 8
      %s133 = scalar_lea.vmem %s2, %s132
      %p134 = scmp.lt.s32.totalorder %s13, 1
      %s135 = scalar_select %p134, %s13, 1
      %s136 = smul.addr %s135, 8
      %s137 = smul.addr %s136, 8
      %s138 = scalar_lea.vmem %s0, %s137
      %p139 = scmp.lt.s32.totalorder %s13, 1
      %s140 = scalar_select %p139, %s13, 1
      %s141 = smul.addr %s140, 2
      %s142 = smul.addr %s141, 8
      %s143 = scalar_lea.vmem %s2, %s142
      %vm144 = vcmask 146432
      %145 = vst.msk [vmem:[#allocation2] sm:$0xff] %vm144, 0.0
      %146 = vst.msk [vmem:[#allocation2 + $0x8] sm:$0xff] %vm144, 0.0
      %vm147 = vcmask 140288
      %148 = vst.msk [vmem:[#allocation2 + $0x10] sm:$0x3] %vm147, 0.0
      %149 = vst.msk [vmem:[#allocation2 + $0x18] sm:$0xff] %vm144, 0.0
      %150 = vst.msk [vmem:[#allocation2 + $0x20] sm:$0xff] %vm144, 0.0
      %151 = vst.msk [vmem:[#allocation2 + $0x28] sm:$0x3] %vm147, 0.0
      %152 = vst.msk [vmem:[#allocation2 + $0x30] sm:$0xff] %vm144, 0.0
      %153 = vst.msk [vmem:[#allocation2 + $0x38] sm:$0xff] %vm144, 0.0
      %154 = vst.msk [vmem:[#allocation2 + $0x40] sm:$0x3] %vm147, 0.0
      %155 = vst.msk [vmem:[#allocation2 + $0x48] sm:$0xff] %vm144, 0.0
      %156 = vst.msk [vmem:[#allocation2 + $0x50] sm:$0xff] %vm144, 0.0
      %157 = vst.msk [vmem:[#allocation2 + $0x58] sm:$0x3] %vm147, 0.0
      %v158 = vld [vmem:[%s138] sm:$0xff]
      %v159 = vld [vmem:[%s138 + $0x8] sm:$0xff]
      %v160 = vld [vmem:[%s138 + $0x10] sm:$0xff]
      %v161 = vld [vmem:[%s138 + $0x18] sm:$0xff]
      %v162 = vld [vmem:[%s138 + $0x20] sm:$0xff]
      %v163 = vld [vmem:[%s138 + $0x28] sm:$0xff]
      %v164 = vld [vmem:[%s138 + $0x30] sm:$0xff]
      %v165 = vld [vmem:[%s138 + $0x38] sm:$0xff]
      %174 = vrot.lane.b32.xlu0 %v158, 1
      %v175 = vpop.permute.xlu0 %174
      %176 = vrot.lane.b32.xlu0 %v159, 1
      %v177 = vpop.permute.xlu0 %176
      %178 = vrot.lane.b32.xlu0 %v160, 1
      %v179 = vpop.permute.xlu0 %178
      %180 = vrot.lane.b32.xlu0 %v161, 1
      %v181 = vpop.permute.xlu0 %180
      %182 = vrot.lane.b32.xlu0 %v162, 1
      %v183 = vpop.permute.xlu0 %182
      %184 = vrot.lane.b32.xlu0 %v163, 1
      %v185 = vpop.permute.xlu0 %184
      %186 = vrot.lane.b32.xlu0 %v164, 1
      %v187 = vpop.permute.xlu0 %186
      %188 = vrot.lane.b32.xlu0 %v165, 1
      %v189 = vpop.permute.xlu0 %188
      %vm198 = vcmask 138248
      %199 = vst.msk [vmem:[#allocation2 + $0x1] sm:$0xff] %vm198, %v175
      %200 = vst.msk [vmem:[#allocation2 + $0x9] sm:$0xff] %vm198, %v177
      %201 = vst.msk [vmem:[#allocation2 + $0x19] sm:$0xff] %vm198, %v179
      %202 = vst.msk [vmem:[#allocation2 + $0x21] sm:$0xff] %vm198, %v181
      %203 = vst.msk [vmem:[#allocation2 + $0x31] sm:$0xff] %vm198, %v183
      %204 = vst.msk [vmem:[#allocation2 + $0x39] sm:$0xff] %vm198, %v185
      %205 = vst.msk [vmem:[#allocation2 + $0x49] sm:$0xff] %vm198, %v187
      %206 = vst.msk [vmem:[#allocation2 + $0x51] sm:$0xff] %vm198, %v189
      %v207 = vld [vmem:[%s1] sm:$0xff]
      %v208 = vld [vmem:[#allocation2] sm:$0xff]
      %v209 = vld [vmem:[#allocation2 + $0x8] sm:$0xff]
      %v210 = vld [vmem:[#allocation2 + $0x10] sm:$0x3]
      %v211 = vld [vmem:[#allocation2 + $0x18] sm:$0xff]
      %v212 = vld [vmem:[#allocation2 + $0x20] sm:$0xff]
      %v213 = vld [vmem:[#allocation2 + $0x28] sm:$0x3]
      %v214 = vld [vmem:[#allocation2 + $0x30] sm:$0xff]
      %v215 = vld [vmem:[#allocation2 + $0x38] sm:$0xff]
      %v216 = vld [vmem:[#allocation2 + $0x40] sm:$0x3]
      %v217 = vld [vmem:[#allocation2 + $0x48] sm:$0xff]
      %v218 = vld [vmem:[#allocation2 + $0x50] sm:$0xff]
      %v219 = vld [vmem:[#allocation2 + $0x58] sm:$0x3]
      %228 = vrot.lane.b32.xlu0 %v208, 127
      %v229 = vpop.permute.xlu0 %228
      %230 = vrot.lane.b32.xlu0 %v209, 127
      %v231 = vpop.permute.xlu0 %230
      %232 = vrot.lane.b32.xlu0 %v211, 127
      %v233 = vpop.permute.xlu0 %232
      %234 = vrot.lane.b32.xlu0 %v212, 127
      %v235 = vpop.permute.xlu0 %234
      %236 = vrot.lane.b32.xlu0 %v214, 127
      %v237 = vpop.permute.xlu0 %236
      %238 = vrot.lane.b32.xlu0 %v215, 127
      %v239 = vpop.permute.xlu0 %238
      %240 = vrot.lane.b32.xlu0 %v217, 127
      %v241 = vpop.permute.xlu0 %240
      %242 = vrot.lane.b32.xlu0 %v218, 127
      %v243 = vpop.permute.xlu0 %242
      %252 = vrot.lane.b32.xlu0 %v208, 126
      %v253 = vpop.permute.xlu0 %252
      %254 = vrot.lane.b32.xlu0 %v209, 126
      %v255 = vpop.permute.xlu0 %254
      %256 = vrot.lane.b32.xlu0 %v211, 126
      %v257 = vpop.permute.xlu0 %256
      %258 = vrot.lane.b32.xlu0 %v212, 126
      %v259 = vpop.permute.xlu0 %258
      %260 = vrot.lane.b32.xlu0 %v214, 126
      %v261 = vpop.permute.xlu0 %260
      %262 = vrot.lane.b32.xlu0 %v215, 126
      %v263 = vpop.permute.xlu0 %262
      %264 = vrot.lane.b32.xlu0 %v217, 126
      %v265 = vpop.permute.xlu0 %264
      %266 = vrot.lane.b32.xlu0 %v218, 126
      %v267 = vpop.permute.xlu0 %266
      %vm280 = vcmask 1046528
      %v281 = vrot.slane %v208, 1
      %v282 = vrot.slane %v209, 1
      %v283 = vsel %vm280, %v281, %v282
      %v284 = vrot.slane %v210, 1
      %v285 = vsel %vm280, %v282, %v284
      %v286 = vrot.slane %v211, 1
      %v287 = vrot.slane %v212, 1
      %v288 = vsel %vm280, %v286, %v287
      %v289 = vrot.slane %v213, 1
      %v290 = vsel %vm280, %v287, %v289
      %v291 = vrot.slane %v214, 1
      %v292 = vrot.slane %v215, 1
      %v293 = vsel %vm280, %v291, %v292
      %v294 = vrot.slane %v216, 1
      %v295 = vsel %vm280, %v292, %v294
      %v296 = vrot.slane %v217, 1
      %v297 = vrot.slane %v218, 1
      %v298 = vsel %vm280, %v296, %v297
      %v299 = vrot.slane %v219, 1
      %v300 = vsel %vm280, %v297, %v299
      %309 = vrot.lane.b32.xlu0 %v283, 127
      %v310 = vpop.permute.xlu0 %309
      %311 = vrot.lane.b32.xlu0 %v285, 127
      %v312 = vpop.permute.xlu0 %311
      %313 = vrot.lane.b32.xlu0 %v288, 127
      %v314 = vpop.permute.xlu0 %313
      %315 = vrot.lane.b32.xlu0 %v290, 127
      %v316 = vpop.permute.xlu0 %315
      %317 = vrot.lane.b32.xlu0 %v293, 127
      %v318 = vpop.permute.xlu0 %317
      %319 = vrot.lane.b32.xlu0 %v295, 127
      %v320 = vpop.permute.xlu0 %319
      %321 = vrot.lane.b32.xlu0 %v298, 127
      %v322 = vpop.permute.xlu0 %321
      %323 = vrot.lane.b32.xlu0 %v300, 127
      %v324 = vpop.permute.xlu0 %323
      %333 = vrot.lane.b32.xlu0 %v283, 126
      %v334 = vpop.permute.xlu0 %333
      %335 = vrot.lane.b32.xlu0 %v285, 126
      %v336 = vpop.permute.xlu0 %335
      %337 = vrot.lane.b32.xlu0 %v288, 126
      %v338 = vpop.permute.xlu0 %337
      %339 = vrot.lane.b32.xlu0 %v290, 126
      %v340 = vpop.permute.xlu0 %339
      %341 = vrot.lane.b32.xlu0 %v293, 126
      %v342 = vpop.permute.xlu0 %341
      %343 = vrot.lane.b32.xlu0 %v295, 126
      %v344 = vpop.permute.xlu0 %343
      %345 = vrot.lane.b32.xlu0 %v298, 126
      %v346 = vpop.permute.xlu0 %345
      %347 = vrot.lane.b32.xlu0 %v300, 126
      %v348 = vpop.permute.xlu0 %347
      %vm357 = vcmask 1045504
      %v358 = vrot.slane %v208, 2
      %v359 = vrot.slane %v209, 2
      %v360 = vsel %vm357, %v358, %v359
      %v361 = vrot.slane %v210, 2
      %v362 = vsel %vm357, %v359, %v361
      %v363 = vrot.slane %v211, 2
      %v364 = vrot.slane %v212, 2
      %v365 = vsel %vm357, %v363, %v364
      %v366 = vrot.slane %v213, 2
      %v367 = vsel %vm357, %v364, %v366
      %v368 = vrot.slane %v214, 2
      %v369 = vrot.slane %v215, 2
      %v370 = vsel %vm357, %v368, %v369
      %v371 = vrot.slane %v216, 2
      %v372 = vsel %vm357, %v369, %v371
      %v373 = vrot.slane %v217, 2
      %v374 = vrot.slane %v218, 2
      %v375 = vsel %vm357, %v373, %v374
      %v376 = vrot.slane %v219, 2
      %v377 = vsel %vm357, %v374, %v376
      %386 = vrot.lane.b32.xlu0 %v360, 127
      %v387 = vpop.permute.xlu0 %386
      %388 = vrot.lane.b32.xlu0 %v362, 127
      %v389 = vpop.permute.xlu0 %388
      %390 = vrot.lane.b32.xlu0 %v365, 127
      %v391 = vpop.permute.xlu0 %390
      %392 = vrot.lane.b32.xlu0 %v367, 127
      %v393 = vpop.permute.xlu0 %392
      %394 = vrot.lane.b32.xlu0 %v370, 127
      %v395 = vpop.permute.xlu0 %394
      %396 = vrot.lane.b32.xlu0 %v372, 127
      %v397 = vpop.permute.xlu0 %396
      %398 = vrot.lane.b32.xlu0 %v375, 127
      %v399 = vpop.permute.xlu0 %398
      %400 = vrot.lane.b32.xlu0 %v377, 127
      %v401 = vpop.permute.xlu0 %400
      %410 = vrot.lane.b32.xlu0 %v360, 126
      %v411 = vpop.permute.xlu0 %410
      %412 = vrot.lane.b32.xlu0 %v362, 126
      %v413 = vpop.permute.xlu0 %412
      %414 = vrot.lane.b32.xlu0 %v365, 126
      %v415 = vpop.permute.xlu0 %414
      %416 = vrot.lane.b32.xlu0 %v367, 126
      %v417 = vpop.permute.xlu0 %416
      %418 = vrot.lane.b32.xlu0 %v370, 126
      %v419 = vpop.permute.xlu0 %418
      %420 = vrot.lane.b32.xlu0 %v372, 126
      %v421 = vpop.permute.xlu0 %420
      %422 = vrot.lane.b32.xlu0 %v375, 126
      %v423 = vpop.permute.xlu0 %422
      %424 = vrot.lane.b32.xlu0 %v377, 126
      %v425 = vpop.permute.xlu0 %424
      %v434 = vcombine.low %v208, %v214
      %v435 = vcombine.high %v208, %v214
      %v437 = vunpack.c.l.s4 1983009808
      %v438 = vunpack.c.0.s8 %v437
      %v439 = vlaneseq
      %v440 = vshrl.u32 %v439, 7
      %v441 = vsub.s32 %v438, %v440
      %v442 = vrot.slane %v434, %v441
      %v444 = vunpack.c.l.s4 1983009808
      %v445 = vunpack.c.0.s8 %v444
      %v446 = vlaneseq
      %v447 = vshrl.u32 %v446, 7
      %v448 = vsub.s32 %v445, %v447
      %v449 = vrot.slane %v435, %v448
      %v450 = vcombine.low %v211, %v217
      %v451 = vcombine.high %v211, %v217
      %v453 = vunpack.c.l.s4 1983009808
      %v454 = vunpack.c.0.s8 %v453
      %v455 = vlaneseq
      %v456 = vshrl.u32 %v455, 7
      %v457 = vsub.s32 %v454, %v456
      %v458 = vrot.slane %v450, %v457
      %v460 = vunpack.c.l.s4 1983009808
      %v461 = vunpack.c.0.s8 %v460
      %v462 = vlaneseq
      %v463 = vshrl.u32 %v462, 7
      %v464 = vsub.s32 %v461, %v463
      %v465 = vrot.slane %v451, %v464
      %v466 = vcombine.low %v229, %v237
      %v467 = vcombine.high %v229, %v237
      %v469 = vunpack.c.l.s4 1983009808
      %v470 = vunpack.c.0.s8 %v469
      %v471 = vlaneseq
      %v472 = vshrl.u32 %v471, 7
      %v473 = vsub.s32 %v470, %v472
      %v474 = vrot.slane %v466, %v473
      %v476 = vunpack.c.l.s4 1983009808
      %v477 = vunpack.c.0.s8 %v476
      %v478 = vlaneseq
      %v479 = vshrl.u32 %v478, 7
      %v480 = vsub.s32 %v477, %v479
      %v481 = vrot.slane %v467, %v480
      %v482 = vcombine.low %v233, %v241
      %v483 = vcombine.high %v233, %v241
      %v485 = vunpack.c.l.s4 1983009808
      %v486 = vunpack.c.0.s8 %v485
      %v487 = vlaneseq
      %v488 = vshrl.u32 %v487, 7
      %v489 = vsub.s32 %v486, %v488
      %v490 = vrot.slane %v482, %v489
      %v492 = vunpack.c.l.s4 1983009808
      %v493 = vunpack.c.0.s8 %v492
      %v494 = vlaneseq
      %v495 = vshrl.u32 %v494, 7
      %v496 = vsub.s32 %v493, %v495
      %v497 = vrot.slane %v483, %v496
      %v498 = vcombine.low %v442, %v458
      %v499 = vcombine.high %v442, %v458
      %v501 = vunpack.c.l.s4 1934713408
      %v502 = vunpack.c.0.s8 %v501
      %v503 = vlaneseq
      %v504 = vshrl.u32 %v503, 7
      %v505 = vsub.s32 %v502, %v504
      %v506 = vrot.slane %v498, %v505
      %v508 = vunpack.c.l.s4 1934713408
      %v509 = vunpack.c.0.s8 %v508
      %v510 = vlaneseq
      %v511 = vshrl.u32 %v510, 7
      %v512 = vsub.s32 %v509, %v511
      %v513 = vrot.slane %v499, %v512
      %v514 = vcombine.low %v449, %v465
      %v515 = vcombine.high %v449, %v465
      %v517 = vunpack.c.l.s4 1934713408
      %v518 = vunpack.c.0.s8 %v517
      %v519 = vlaneseq
      %v520 = vshrl.u32 %v519, 7
      %v521 = vsub.s32 %v518, %v520
      %v522 = vrot.slane %v514, %v521
      %v524 = vunpack.c.l.s4 1934713408
      %v525 = vunpack.c.0.s8 %v524
      %v526 = vlaneseq
      %v527 = vshrl.u32 %v526, 7
      %v528 = vsub.s32 %v525, %v527
      %v529 = vrot.slane %v515, %v528
      %v530 = vcombine.low %v474, %v490
      %v531 = vcombine.high %v474, %v490
      %v533 = vunpack.c.l.s4 1934713408
      %v534 = vunpack.c.0.s8 %v533
      %v535 = vlaneseq
      %v536 = vshrl.u32 %v535, 7
      %v537 = vsub.s32 %v534, %v536
      %v538 = vrot.slane %v530, %v537
      %v540 = vunpack.c.l.s4 1934713408
      %v541 = vunpack.c.0.s8 %v540
      %v542 = vlaneseq
      %v543 = vshrl.u32 %v542, 7
      %v544 = vsub.s32 %v541, %v543
      %v545 = vrot.slane %v531, %v544
      %v546 = vcombine.low %v481, %v497
      %v547 = vcombine.high %v481, %v497
      %v549 = vunpack.c.l.s4 1934713408
      %v550 = vunpack.c.0.s8 %v549
      %v551 = vlaneseq
      %v552 = vshrl.u32 %v551, 7
      %v553 = vsub.s32 %v550, %v552
      %v554 = vrot.slane %v546, %v553
      %v556 = vunpack.c.l.s4 1934713408
      %v557 = vunpack.c.0.s8 %v556
      %v558 = vlaneseq
      %v559 = vshrl.u32 %v558, 7
      %v560 = vsub.s32 %v557, %v559
      %v561 = vrot.slane %v547, %v560
      %v562 = vcombine.low %v506, %v538
      %v563 = vcombine.high %v506, %v538
      %v564 = vcombine.low %v513, %v545
      %v565 = vcombine.high %v513, %v545
      %v566 = vcombine.low %v522, %v554
      %v567 = vcombine.high %v522, %v554
      %v568 = vcombine.low %v529, %v561
      %v569 = vcombine.high %v529, %v561
      %v570 = vcombine.low %v253, %v261
      %v571 = vcombine.high %v253, %v261
      %v573 = vunpack.c.l.s4 1983009808
      %v574 = vunpack.c.0.s8 %v573
      %v575 = vlaneseq
      %v576 = vshrl.u32 %v575, 7
      %v577 = vsub.s32 %v574, %v576
      %v578 = vrot.slane %v570, %v577
      %v580 = vunpack.c.l.s4 1983009808
      %v581 = vunpack.c.0.s8 %v580
      %v582 = vlaneseq
      %v583 = vshrl.u32 %v582, 7
      %v584 = vsub.s32 %v581, %v583
      %v585 = vrot.slane %v571, %v584
      %v586 = vcombine.low %v257, %v265
      %v587 = vcombine.high %v257, %v265
      %v589 = vunpack.c.l.s4 1983009808
      %v590 = vunpack.c.0.s8 %v589
      %v591 = vlaneseq
      %v592 = vshrl.u32 %v591, 7
      %v593 = vsub.s32 %v590, %v592
      %v594 = vrot.slane %v586, %v593
      %v596 = vunpack.c.l.s4 1983009808
      %v597 = vunpack.c.0.s8 %v596
      %v598 = vlaneseq
      %v599 = vshrl.u32 %v598, 7
      %v600 = vsub.s32 %v597, %v599
      %v601 = vrot.slane %v587, %v600
      %v602 = vcombine.low %v283, %v293
      %v603 = vcombine.high %v283, %v293
      %v605 = vunpack.c.l.s4 1983009808
      %v606 = vunpack.c.0.s8 %v605
      %v607 = vlaneseq
      %v608 = vshrl.u32 %v607, 7
      %v609 = vsub.s32 %v606, %v608
      %v610 = vrot.slane %v602, %v609
      %v612 = vunpack.c.l.s4 1983009808
      %v613 = vunpack.c.0.s8 %v612
      %v614 = vlaneseq
      %v615 = vshrl.u32 %v614, 7
      %v616 = vsub.s32 %v613, %v615
      %v617 = vrot.slane %v603, %v616
      %v618 = vcombine.low %v288, %v298
      %v619 = vcombine.high %v288, %v298
      %v621 = vunpack.c.l.s4 1983009808
      %v622 = vunpack.c.0.s8 %v621
      %v623 = vlaneseq
      %v624 = vshrl.u32 %v623, 7
      %v625 = vsub.s32 %v622, %v624
      %v626 = vrot.slane %v618, %v625
      %v628 = vunpack.c.l.s4 1983009808
      %v629 = vunpack.c.0.s8 %v628
      %v630 = vlaneseq
      %v631 = vshrl.u32 %v630, 7
      %v632 = vsub.s32 %v629, %v631
      %v633 = vrot.slane %v619, %v632
      %v634 = vcombine.low %v578, %v594
      %v635 = vcombine.high %v578, %v594
      %v637 = vunpack.c.l.s4 1934713408
      %v638 = vunpack.c.0.s8 %v637
      %v639 = vlaneseq
      %v640 = vshrl.u32 %v639, 7
      %v641 = vsub.s32 %v638, %v640
      %v642 = vrot.slane %v634, %v641
      %v644 = vunpack.c.l.s4 1934713408
      %v645 = vunpack.c.0.s8 %v644
      %v646 = vlaneseq
      %v647 = vshrl.u32 %v646, 7
      %v648 = vsub.s32 %v645, %v647
      %v649 = vrot.slane %v635, %v648
      %v650 = vcombine.low %v585, %v601
      %v651 = vcombine.high %v585, %v601
      %v653 = vunpack.c.l.s4 1934713408
      %v654 = vunpack.c.0.s8 %v653
      %v655 = vlaneseq
      %v656 = vshrl.u32 %v655, 7
      %v657 = vsub.s32 %v654, %v656
      %v658 = vrot.slane %v650, %v657
      %v660 = vunpack.c.l.s4 1934713408
      %v661 = vunpack.c.0.s8 %v660
      %v662 = vlaneseq
      %v663 = vshrl.u32 %v662, 7
      %v664 = vsub.s32 %v661, %v663
      %v665 = vrot.slane %v651, %v664
      %v666 = vcombine.low %v610, %v626
      %v667 = vcombine.high %v610, %v626
      %v669 = vunpack.c.l.s4 1934713408
      %v670 = vunpack.c.0.s8 %v669
      %v671 = vlaneseq
      %v672 = vshrl.u32 %v671, 7
      %v673 = vsub.s32 %v670, %v672
      %v674 = vrot.slane %v666, %v673
      %v676 = vunpack.c.l.s4 1934713408
      %v677 = vunpack.c.0.s8 %v676
      %v678 = vlaneseq
      %v679 = vshrl.u32 %v678, 7
      %v680 = vsub.s32 %v677, %v679
      %v681 = vrot.slane %v667, %v680
      %v682 = vcombine.low %v617, %v633
      %v683 = vcombine.high %v617, %v633
      %v685 = vunpack.c.l.s4 1934713408
      %v686 = vunpack.c.0.s8 %v685
      %v687 = vlaneseq
      %v688 = vshrl.u32 %v687, 7
      %v689 = vsub.s32 %v686, %v688
      %v690 = vrot.slane %v682, %v689
      %v692 = vunpack.c.l.s4 1934713408
      %v693 = vunpack.c.0.s8 %v692
      %v694 = vlaneseq
      %v695 = vshrl.u32 %v694, 7
      %v696 = vsub.s32 %v693, %v695
      %v697 = vrot.slane %v683, %v696
      %v698 = vcombine.low %v642, %v674
      %v699 = vcombine.high %v642, %v674
      %v700 = vcombine.low %v649, %v681
      %v701 = vcombine.high %v649, %v681
      %v702 = vcombine.low %v658, %v690
      %v703 = vcombine.high %v658, %v690
      %v704 = vcombine.low %v665, %v697
      %v705 = vcombine.high %v665, %v697
      %v706 = vcombine.low %v310, %v318
      %v707 = vcombine.high %v310, %v318
      %v709 = vunpack.c.l.s4 1983009808
      %v710 = vunpack.c.0.s8 %v709
      %v711 = vlaneseq
      %v712 = vshrl.u32 %v711, 7
      %v713 = vsub.s32 %v710, %v712
      %v714 = vrot.slane %v706, %v713
      %v716 = vunpack.c.l.s4 1983009808
      %v717 = vunpack.c.0.s8 %v716
      %v718 = vlaneseq
      %v719 = vshrl.u32 %v718, 7
      %v720 = vsub.s32 %v717, %v719
      %v721 = vrot.slane %v707, %v720
      %v722 = vcombine.low %v314, %v322
      %v723 = vcombine.high %v314, %v322
      %v725 = vunpack.c.l.s4 1983009808
      %v726 = vunpack.c.0.s8 %v725
      %v727 = vlaneseq
      %v728 = vshrl.u32 %v727, 7
      %v729 = vsub.s32 %v726, %v728
      %v730 = vrot.slane %v722, %v729
      %v732 = vunpack.c.l.s4 1983009808
      %v733 = vunpack.c.0.s8 %v732
      %v734 = vlaneseq
      %v735 = vshrl.u32 %v734, 7
      %v736 = vsub.s32 %v733, %v735
      %v737 = vrot.slane %v723, %v736
      %v738 = vcombine.low %v334, %v342
      %v739 = vcombine.high %v334, %v342
      %v741 = vunpack.c.l.s4 1983009808
      %v742 = vunpack.c.0.s8 %v741
      %v743 = vlaneseq
      %v744 = vshrl.u32 %v743, 7
      %v745 = vsub.s32 %v742, %v744
      %v746 = vrot.slane %v738, %v745
      %v748 = vunpack.c.l.s4 1983009808
      %v749 = vunpack.c.0.s8 %v748
      %v750 = vlaneseq
      %v751 = vshrl.u32 %v750, 7
      %v752 = vsub.s32 %v749, %v751
      %v753 = vrot.slane %v739, %v752
      %v754 = vcombine.low %v338, %v346
      %v755 = vcombine.high %v338, %v346
      %v757 = vunpack.c.l.s4 1983009808
      %v758 = vunpack.c.0.s8 %v757
      %v759 = vlaneseq
      %v760 = vshrl.u32 %v759, 7
      %v761 = vsub.s32 %v758, %v760
      %v762 = vrot.slane %v754, %v761
      %v764 = vunpack.c.l.s4 1983009808
      %v765 = vunpack.c.0.s8 %v764
      %v766 = vlaneseq
      %v767 = vshrl.u32 %v766, 7
      %v768 = vsub.s32 %v765, %v767
      %v769 = vrot.slane %v755, %v768
      %v770 = vcombine.low %v714, %v730
      %v771 = vcombine.high %v714, %v730
      %v773 = vunpack.c.l.s4 1934713408
      %v774 = vunpack.c.0.s8 %v773
      %v775 = vlaneseq
      %v776 = vshrl.u32 %v775, 7
      %v777 = vsub.s32 %v774, %v776
      %v778 = vrot.slane %v770, %v777
      %v780 = vunpack.c.l.s4 1934713408
      %v781 = vunpack.c.0.s8 %v780
      %v782 = vlaneseq
      %v783 = vshrl.u32 %v782, 7
      %v784 = vsub.s32 %v781, %v783
      %v785 = vrot.slane %v771, %v784
      %v786 = vcombine.low %v721, %v737
      %v787 = vcombine.high %v721, %v737
      %v789 = vunpack.c.l.s4 1934713408
      %v790 = vunpack.c.0.s8 %v789
      %v791 = vlaneseq
      %v792 = vshrl.u32 %v791, 7
      %v793 = vsub.s32 %v790, %v792
      %v794 = vrot.slane %v786, %v793
      %v796 = vunpack.c.l.s4 1934713408
      %v797 = vunpack.c.0.s8 %v796
      %v798 = vlaneseq
      %v799 = vshrl.u32 %v798, 7
      %v800 = vsub.s32 %v797, %v799
      %v801 = vrot.slane %v787, %v800
      %v802 = vcombine.low %v746, %v762
      %v803 = vcombine.high %v746, %v762
      %v805 = vunpack.c.l.s4 1934713408
      %v806 = vunpack.c.0.s8 %v805
      %v807 = vlaneseq
      %v808 = vshrl.u32 %v807, 7
      %v809 = vsub.s32 %v806, %v808
      %v810 = vrot.slane %v802, %v809
      %v812 = vunpack.c.l.s4 1934713408
      %v813 = vunpack.c.0.s8 %v812
      %v814 = vlaneseq
      %v815 = vshrl.u32 %v814, 7
      %v816 = vsub.s32 %v813, %v815
      %v817 = vrot.slane %v803, %v816
      %v818 = vcombine.low %v753, %v769
      %v819 = vcombine.high %v753, %v769
      %v821 = vunpack.c.l.s4 1934713408
      %v822 = vunpack.c.0.s8 %v821
      %v823 = vlaneseq
      %v824 = vshrl.u32 %v823, 7
      %v825 = vsub.s32 %v822, %v824
      %v826 = vrot.slane %v818, %v825
      %v828 = vunpack.c.l.s4 1934713408
      %v829 = vunpack.c.0.s8 %v828
      %v830 = vlaneseq
      %v831 = vshrl.u32 %v830, 7
      %v832 = vsub.s32 %v829, %v831
      %v833 = vrot.slane %v819, %v832
      %v834 = vcombine.low %v778, %v810
      %v835 = vcombine.high %v778, %v810
      %v836 = vcombine.low %v785, %v817
      %v837 = vcombine.high %v785, %v817
      %v838 = vcombine.low %v794, %v826
      %v839 = vcombine.high %v794, %v826
      %v840 = vcombine.low %v801, %v833
      %v841 = vcombine.high %v801, %v833
      %v842 = vcombine.low %v360, %v370
      %v843 = vcombine.high %v360, %v370
      %v845 = vunpack.c.l.s4 1983009808
      %v846 = vunpack.c.0.s8 %v845
      %v847 = vlaneseq
      %v848 = vshrl.u32 %v847, 7
      %v849 = vsub.s32 %v846, %v848
      %v850 = vrot.slane %v842, %v849
      %v852 = vunpack.c.l.s4 1983009808
      %v853 = vunpack.c.0.s8 %v852
      %v854 = vlaneseq
      %v855 = vshrl.u32 %v854, 7
      %v856 = vsub.s32 %v853, %v855
      %v857 = vrot.slane %v843, %v856
      %v858 = vcombine.low %v365, %v375
      %v859 = vcombine.high %v365, %v375
      %v861 = vunpack.c.l.s4 1983009808
      %v862 = vunpack.c.0.s8 %v861
      %v863 = vlaneseq
      %v864 = vshrl.u32 %v863, 7
      %v865 = vsub.s32 %v862, %v864
      %v866 = vrot.slane %v858, %v865
      %v868 = vunpack.c.l.s4 1983009808
      %v869 = vunpack.c.0.s8 %v868
      %v870 = vlaneseq
      %v871 = vshrl.u32 %v870, 7
      %v872 = vsub.s32 %v869, %v871
      %v873 = vrot.slane %v859, %v872
      %v874 = vcombine.low %v387, %v395
      %v875 = vcombine.high %v387, %v395
      %v877 = vunpack.c.l.s4 1983009808
      %v878 = vunpack.c.0.s8 %v877
      %v879 = vlaneseq
      %v880 = vshrl.u32 %v879, 7
      %v881 = vsub.s32 %v878, %v880
      %v882 = vrot.slane %v874, %v881
      %v884 = vunpack.c.l.s4 1983009808
      %v885 = vunpack.c.0.s8 %v884
      %v886 = vlaneseq
      %v887 = vshrl.u32 %v886, 7
      %v888 = vsub.s32 %v885, %v887
      %v889 = vrot.slane %v875, %v888
      %v890 = vcombine.low %v391, %v399
      %v891 = vcombine.high %v391, %v399
      %v893 = vunpack.c.l.s4 1983009808
      %v894 = vunpack.c.0.s8 %v893
      %v895 = vlaneseq
      %v896 = vshrl.u32 %v895, 7
      %v897 = vsub.s32 %v894, %v896
      %v898 = vrot.slane %v890, %v897
      %v900 = vunpack.c.l.s4 1983009808
      %v901 = vunpack.c.0.s8 %v900
      %v902 = vlaneseq
      %v903 = vshrl.u32 %v902, 7
      %v904 = vsub.s32 %v901, %v903
      %v905 = vrot.slane %v891, %v904
      %v906 = vcombine.low %v850, %v866
      %v907 = vcombine.high %v850, %v866
      %v909 = vunpack.c.l.s4 1934713408
      %v910 = vunpack.c.0.s8 %v909
      %v911 = vlaneseq
      %v912 = vshrl.u32 %v911, 7
      %v913 = vsub.s32 %v910, %v912
      %v914 = vrot.slane %v906, %v913
      %v916 = vunpack.c.l.s4 1934713408
      %v917 = vunpack.c.0.s8 %v916
      %v918 = vlaneseq
      %v919 = vshrl.u32 %v918, 7
      %v920 = vsub.s32 %v917, %v919
      %v921 = vrot.slane %v907, %v920
      %v922 = vcombine.low %v857, %v873
      %v923 = vcombine.high %v857, %v873
      %v925 = vunpack.c.l.s4 1934713408
      %v926 = vunpack.c.0.s8 %v925
      %v927 = vlaneseq
      %v928 = vshrl.u32 %v927, 7
      %v929 = vsub.s32 %v926, %v928
      %v930 = vrot.slane %v922, %v929
      %v932 = vunpack.c.l.s4 1934713408
      %v933 = vunpack.c.0.s8 %v932
      %v934 = vlaneseq
      %v935 = vshrl.u32 %v934, 7
      %v936 = vsub.s32 %v933, %v935
      %v937 = vrot.slane %v923, %v936
      %v938 = vcombine.low %v882, %v898
      %v939 = vcombine.high %v882, %v898
      %v941 = vunpack.c.l.s4 1934713408
      %v942 = vunpack.c.0.s8 %v941
      %v943 = vlaneseq
      %v944 = vshrl.u32 %v943, 7
      %v945 = vsub.s32 %v942, %v944
      %v946 = vrot.slane %v938, %v945
      %v948 = vunpack.c.l.s4 1934713408
      %v949 = vunpack.c.0.s8 %v948
      %v950 = vlaneseq
      %v951 = vshrl.u32 %v950, 7
      %v952 = vsub.s32 %v949, %v951
      %v953 = vrot.slane %v939, %v952
      %v954 = vcombine.low %v889, %v905
      %v955 = vcombine.high %v889, %v905
      %v957 = vunpack.c.l.s4 1934713408
      %v958 = vunpack.c.0.s8 %v957
      %v959 = vlaneseq
      %v960 = vshrl.u32 %v959, 7
      %v961 = vsub.s32 %v958, %v960
      %v962 = vrot.slane %v954, %v961
      %v964 = vunpack.c.l.s4 1934713408
      %v965 = vunpack.c.0.s8 %v964
      %v966 = vlaneseq
      %v967 = vshrl.u32 %v966, 7
      %v968 = vsub.s32 %v965, %v967
      %v969 = vrot.slane %v955, %v968
      %v970 = vcombine.low %v914, %v946
      %v971 = vcombine.high %v914, %v946
      %v972 = vcombine.low %v921, %v953
      %v973 = vcombine.high %v921, %v953
      %v974 = vcombine.low %v930, %v962
      %v975 = vcombine.high %v930, %v962
      %v976 = vcombine.low %v937, %v969
      %v977 = vcombine.high %v937, %v969
      %v978 = vcombine.low %v411, %v419
      %v979 = vcombine.high %v411, %v419
      %v981 = vunpack.c.l.s4 1983009808
      %v982 = vunpack.c.0.s8 %v981
      %v983 = vlaneseq
      %v984 = vshrl.u32 %v983, 7
      %v985 = vsub.s32 %v982, %v984
      %v986 = vrot.slane %v978, %v985
      %v988 = vunpack.c.l.s4 1983009808
      %v989 = vunpack.c.0.s8 %v988
      %v990 = vlaneseq
      %v991 = vshrl.u32 %v990, 7
      %v992 = vsub.s32 %v989, %v991
      %v993 = vrot.slane %v979, %v992
      %v994 = vcombine.low %v415, %v423
      %v995 = vcombine.high %v415, %v423
      %v997 = vunpack.c.l.s4 1983009808
      %v998 = vunpack.c.0.s8 %v997
      %v999 = vlaneseq
      %v1000 = vshrl.u32 %v999, 7
      %v1001 = vsub.s32 %v998, %v1000
      %v1002 = vrot.slane %v994, %v1001
      %v1004 = vunpack.c.l.s4 1983009808
      %v1005 = vunpack.c.0.s8 %v1004
      %v1006 = vlaneseq
      %v1007 = vshrl.u32 %v1006, 7
      %v1008 = vsub.s32 %v1005, %v1007
      %v1009 = vrot.slane %v995, %v1008
      %v1010 = vcombine.low %v986, %v1002
      %v1011 = vcombine.high %v986, %v1002
      %v1013 = vunpack.c.l.s4 1934713408
      %v1014 = vunpack.c.0.s8 %v1013
      %v1015 = vlaneseq
      %v1016 = vshrl.u32 %v1015, 7
      %v1017 = vsub.s32 %v1014, %v1016
      %v1018 = vrot.slane %v1010, %v1017
      %v1020 = vunpack.c.l.s4 1934713408
      %v1021 = vunpack.c.0.s8 %v1020
      %v1022 = vlaneseq
      %v1023 = vshrl.u32 %v1022, 7
      %v1024 = vsub.s32 %v1021, %v1023
      %v1025 = vrot.slane %v1011, %v1024
      %v1026 = vcombine.low %v993, %v1009
      %v1027 = vcombine.high %v993, %v1009
      %v1029 = vunpack.c.l.s4 1934713408
      %v1030 = vunpack.c.0.s8 %v1029
      %v1031 = vlaneseq
      %v1032 = vshrl.u32 %v1031, 7
      %v1033 = vsub.s32 %v1030, %v1032
      %v1034 = vrot.slane %v1026, %v1033
      %v1036 = vunpack.c.l.s4 1934713408
      %v1037 = vunpack.c.0.s8 %v1036
      %v1038 = vlaneseq
      %v1039 = vshrl.u32 %v1038, 7
      %v1040 = vsub.s32 %v1037, %v1039
      %v1041 = vrot.slane %v1027, %v1040
      %v1042 = vcombine.high %v1018, 0.0
      %v1043 = vcombine.high %v1025, 0.0
      %v1044 = vcombine.high %v1034, 0.0
      %v1045 = vcombine.high %v1041, 0.0
      %v1046 = vcombine.low %v209, %v215
      %v1047 = vcombine.high %v209, %v215
      %v1049 = vunpack.c.l.s4 1983009808
      %v1050 = vunpack.c.0.s8 %v1049
      %v1051 = vlaneseq
      %v1052 = vshrl.u32 %v1051, 7
      %v1053 = vsub.s32 %v1050, %v1052
      %v1054 = vrot.slane %v1046, %v1053
      %v1056 = vunpack.c.l.s4 1983009808
      %v1057 = vunpack.c.0.s8 %v1056
      %v1058 = vlaneseq
      %v1059 = vshrl.u32 %v1058, 7
      %v1060 = vsub.s32 %v1057, %v1059
      %v1061 = vrot.slane %v1047, %v1060
      %v1062 = vcombine.low %v212, %v218
      %v1063 = vcombine.high %v212, %v218
      %v1065 = vunpack.c.l.s4 1983009808
      %v1066 = vunpack.c.0.s8 %v1065
      %v1067 = vlaneseq
      %v1068 = vshrl.u32 %v1067, 7
      %v1069 = vsub.s32 %v1066, %v1068
      %v1070 = vrot.slane %v1062, %v1069
      %v1072 = vunpack.c.l.s4 1983009808
      %v1073 = vunpack.c.0.s8 %v1072
      %v1074 = vlaneseq
      %v1075 = vshrl.u32 %v1074, 7
      %v1076 = vsub.s32 %v1073, %v1075
      %v1077 = vrot.slane %v1063, %v1076
      %v1078 = vcombine.low %v231, %v239
      %v1079 = vcombine.high %v231, %v239
      %v1081 = vunpack.c.l.s4 1983009808
      %v1082 = vunpack.c.0.s8 %v1081
      %v1083 = vlaneseq
      %v1084 = vshrl.u32 %v1083, 7
      %v1085 = vsub.s32 %v1082, %v1084
      %v1086 = vrot.slane %v1078, %v1085
      %v1088 = vunpack.c.l.s4 1983009808
      %v1089 = vunpack.c.0.s8 %v1088
      %v1090 = vlaneseq
      %v1091 = vshrl.u32 %v1090, 7
      %v1092 = vsub.s32 %v1089, %v1091
      %v1093 = vrot.slane %v1079, %v1092
      %v1094 = vcombine.low %v235, %v243
      %v1095 = vcombine.high %v235, %v243
      %v1097 = vunpack.c.l.s4 1983009808
      %v1098 = vunpack.c.0.s8 %v1097
      %v1099 = vlaneseq
      %v1100 = vshrl.u32 %v1099, 7
      %v1101 = vsub.s32 %v1098, %v1100
      %v1102 = vrot.slane %v1094, %v1101
      %v1104 = vunpack.c.l.s4 1983009808
      %v1105 = vunpack.c.0.s8 %v1104
      %v1106 = vlaneseq
      %v1107 = vshrl.u32 %v1106, 7
      %v1108 = vsub.s32 %v1105, %v1107
      %v1109 = vrot.slane %v1095, %v1108
      %v1110 = vcombine.low %v1054, %v1070
      %v1111 = vcombine.high %v1054, %v1070
      %v1113 = vunpack.c.l.s4 1934713408
      %v1114 = vunpack.c.0.s8 %v1113
      %v1115 = vlaneseq
      %v1116 = vshrl.u32 %v1115, 7
      %v1117 = vsub.s32 %v1114, %v1116
      %v1118 = vrot.slane %v1110, %v1117
      %v1120 = vunpack.c.l.s4 1934713408
      %v1121 = vunpack.c.0.s8 %v1120
      %v1122 = vlaneseq
      %v1123 = vshrl.u32 %v1122, 7
      %v1124 = vsub.s32 %v1121, %v1123
      %v1125 = vrot.slane %v1111, %v1124
      %v1126 = vcombine.low %v1061, %v1077
      %v1127 = vcombine.high %v1061, %v1077
      %v1129 = vunpack.c.l.s4 1934713408
      %v1130 = vunpack.c.0.s8 %v1129
      %v1131 = vlaneseq
      %v1132 = vshrl.u32 %v1131, 7
      %v1133 = vsub.s32 %v1130, %v1132
      %v1134 = vrot.slane %v1126, %v1133
      %v1136 = vunpack.c.l.s4 1934713408
      %v1137 = vunpack.c.0.s8 %v1136
      %v1138 = vlaneseq
      %v1139 = vshrl.u32 %v1138, 7
      %v1140 = vsub.s32 %v1137, %v1139
      %v1141 = vrot.slane %v1127, %v1140
      %v1142 = vcombine.low %v1086, %v1102
      %v1143 = vcombine.high %v1086, %v1102
      %v1145 = vunpack.c.l.s4 1934713408
      %v1146 = vunpack.c.0.s8 %v1145
      %v1147 = vlaneseq
      %v1148 = vshrl.u32 %v1147, 7
      %v1149 = vsub.s32 %v1146, %v1148
      %v1150 = vrot.slane %v1142, %v1149
      %v1152 = vunpack.c.l.s4 1934713408
      %v1153 = vunpack.c.0.s8 %v1152
      %v1154 = vlaneseq
      %v1155 = vshrl.u32 %v1154, 7
      %v1156 = vsub.s32 %v1153, %v1155
      %v1157 = vrot.slane %v1143, %v1156
      %v1158 = vcombine.low %v1093, %v1109
      %v1159 = vcombine.high %v1093, %v1109
      %v1161 = vunpack.c.l.s4 1934713408
      %v1162 = vunpack.c.0.s8 %v1161
      %v1163 = vlaneseq
      %v1164 = vshrl.u32 %v1163, 7
      %v1165 = vsub.s32 %v1162, %v1164
      %v1166 = vrot.slane %v1158, %v1165
      %v1168 = vunpack.c.l.s4 1934713408
      %v1169 = vunpack.c.0.s8 %v1168
      %v1170 = vlaneseq
      %v1171 = vshrl.u32 %v1170, 7
      %v1172 = vsub.s32 %v1169, %v1171
      %v1173 = vrot.slane %v1159, %v1172
      %v1174 = vcombine.low %v1118, %v1150
      %v1175 = vcombine.high %v1118, %v1150
      %v1176 = vcombine.low %v1125, %v1157
      %v1177 = vcombine.high %v1125, %v1157
      %v1178 = vcombine.low %v1134, %v1166
      %v1179 = vcombine.high %v1134, %v1166
      %v1180 = vcombine.low %v1141, %v1173
      %v1181 = vcombine.high %v1141, %v1173
      %v1182 = vcombine.low %v255, %v263
      %v1183 = vcombine.high %v255, %v263
      %v1185 = vunpack.c.l.s4 1983009808
      %v1186 = vunpack.c.0.s8 %v1185
      %v1187 = vlaneseq
      %v1188 = vshrl.u32 %v1187, 7
      %v1189 = vsub.s32 %v1186, %v1188
      %v1190 = vrot.slane %v1182, %v1189
      %v1192 = vunpack.c.l.s4 1983009808
      %v1193 = vunpack.c.0.s8 %v1192
      %v1194 = vlaneseq
      %v1195 = vshrl.u32 %v1194, 7
      %v1196 = vsub.s32 %v1193, %v1195
      %v1197 = vrot.slane %v1183, %v1196
      %v1198 = vcombine.low %v259, %v267
      %v1199 = vcombine.high %v259, %v267
      %v1201 = vunpack.c.l.s4 1983009808
      %v1202 = vunpack.c.0.s8 %v1201
      %v1203 = vlaneseq
      %v1204 = vshrl.u32 %v1203, 7
      %v1205 = vsub.s32 %v1202, %v1204
      %v1206 = vrot.slane %v1198, %v1205
      %v1208 = vunpack.c.l.s4 1983009808
      %v1209 = vunpack.c.0.s8 %v1208
      %v1210 = vlaneseq
      %v1211 = vshrl.u32 %v1210, 7
      %v1212 = vsub.s32 %v1209, %v1211
      %v1213 = vrot.slane %v1199, %v1212
      %v1214 = vcombine.low %v285, %v295
      %v1215 = vcombine.high %v285, %v295
      %v1217 = vunpack.c.l.s4 1983009808
      %v1218 = vunpack.c.0.s8 %v1217
      %v1219 = vlaneseq
      %v1220 = vshrl.u32 %v1219, 7
      %v1221 = vsub.s32 %v1218, %v1220
      %v1222 = vrot.slane %v1214, %v1221
      %v1224 = vunpack.c.l.s4 1983009808
      %v1225 = vunpack.c.0.s8 %v1224
      %v1226 = vlaneseq
      %v1227 = vshrl.u32 %v1226, 7
      %v1228 = vsub.s32 %v1225, %v1227
      %v1229 = vrot.slane %v1215, %v1228
      %v1230 = vcombine.low %v290, %v300
      %v1231 = vcombine.high %v290, %v300
      %v1233 = vunpack.c.l.s4 1983009808
      %v1234 = vunpack.c.0.s8 %v1233
      %v1235 = vlaneseq
      %v1236 = vshrl.u32 %v1235, 7
      %v1237 = vsub.s32 %v1234, %v1236
      %v1238 = vrot.slane %v1230, %v1237
      %v1240 = vunpack.c.l.s4 1983009808
      %v1241 = vunpack.c.0.s8 %v1240
      %v1242 = vlaneseq
      %v1243 = vshrl.u32 %v1242, 7
      %v1244 = vsub.s32 %v1241, %v1243
      %v1245 = vrot.slane %v1231, %v1244
      %v1246 = vcombine.low %v1190, %v1206
      %v1247 = vcombine.high %v1190, %v1206
      %v1249 = vunpack.c.l.s4 1934713408
      %v1250 = vunpack.c.0.s8 %v1249
      %v1251 = vlaneseq
      %v1252 = vshrl.u32 %v1251, 7
      %v1253 = vsub.s32 %v1250, %v1252
      %v1254 = vrot.slane %v1246, %v1253
      %v1256 = vunpack.c.l.s4 1934713408
      %v1257 = vunpack.c.0.s8 %v1256
      %v1258 = vlaneseq
      %v1259 = vshrl.u32 %v1258, 7
      %v1260 = vsub.s32 %v1257, %v1259
      %v1261 = vrot.slane %v1247, %v1260
      %v1262 = vcombine.low %v1197, %v1213
      %v1263 = vcombine.high %v1197, %v1213
      %v1265 = vunpack.c.l.s4 1934713408
      %v1266 = vunpack.c.0.s8 %v1265
      %v1267 = vlaneseq
      %v1268 = vshrl.u32 %v1267, 7
      %v1269 = vsub.s32 %v1266, %v1268
      %v1270 = vrot.slane %v1262, %v1269
      %v1272 = vunpack.c.l.s4 1934713408
      %v1273 = vunpack.c.0.s8 %v1272
      %v1274 = vlaneseq
      %v1275 = vshrl.u32 %v1274, 7
      %v1276 = vsub.s32 %v1273, %v1275
      %v1277 = vrot.slane %v1263, %v1276
      %v1278 = vcombine.low %v1222, %v1238
      %v1279 = vcombine.high %v1222, %v1238
      %v1281 = vunpack.c.l.s4 1934713408
      %v1282 = vunpack.c.0.s8 %v1281
      %v1283 = vlaneseq
      %v1284 = vshrl.u32 %v1283, 7
      %v1285 = vsub.s32 %v1282, %v1284
      %v1286 = vrot.slane %v1278, %v1285
      %v1288 = vunpack.c.l.s4 1934713408
      %v1289 = vunpack.c.0.s8 %v1288
      %v1290 = vlaneseq
      %v1291 = vshrl.u32 %v1290, 7
      %v1292 = vsub.s32 %v1289, %v1291
      %v1293 = vrot.slane %v1279, %v1292
      %v1294 = vcombine.low %v1229, %v1245
      %v1295 = vcombine.high %v1229, %v1245
      %v1297 = vunpack.c.l.s4 1934713408
      %v1298 = vunpack.c.0.s8 %v1297
      %v1299 = vlaneseq
      %v1300 = vshrl.u32 %v1299, 7
      %v1301 = vsub.s32 %v1298, %v1300
      %v1302 = vrot.slane %v1294, %v1301
      %v1304 = vunpack.c.l.s4 1934713408
      %v1305 = vunpack.c.0.s8 %v1304
      %v1306 = vlaneseq
      %v1307 = vshrl.u32 %v1306, 7
      %v1308 = vsub.s32 %v1305, %v1307
      %v1309 = vrot.slane %v1295, %v1308
      %v1310 = vcombine.low %v1254, %v1286
      %v1311 = vcombine.high %v1254, %v1286
      %v1312 = vcombine.low %v1261, %v1293
      %v1313 = vcombine.high %v1261, %v1293
      %v1314 = vcombine.low %v1270, %v1302
      %v1315 = vcombine.high %v1270, %v1302
      %v1316 = vcombine.low %v1277, %v1309
      %v1317 = vcombine.high %v1277, %v1309
      %v1318 = vcombine.low %v312, %v320
      %v1319 = vcombine.high %v312, %v320
      %v1321 = vunpack.c.l.s4 1983009808
      %v1322 = vunpack.c.0.s8 %v1321
      %v1323 = vlaneseq
      %v1324 = vshrl.u32 %v1323, 7
      %v1325 = vsub.s32 %v1322, %v1324
      %v1326 = vrot.slane %v1318, %v1325
      %v1328 = vunpack.c.l.s4 1983009808
      %v1329 = vunpack.c.0.s8 %v1328
      %v1330 = vlaneseq
      %v1331 = vshrl.u32 %v1330, 7
      %v1332 = vsub.s32 %v1329, %v1331
      %v1333 = vrot.slane %v1319, %v1332
      %v1334 = vcombine.low %v316, %v324
      %v1335 = vcombine.high %v316, %v324
      %v1337 = vunpack.c.l.s4 1983009808
      %v1338 = vunpack.c.0.s8 %v1337
      %v1339 = vlaneseq
      %v1340 = vshrl.u32 %v1339, 7
      %v1341 = vsub.s32 %v1338, %v1340
      %v1342 = vrot.slane %v1334, %v1341
      %v1344 = vunpack.c.l.s4 1983009808
      %v1345 = vunpack.c.0.s8 %v1344
      %v1346 = vlaneseq
      %v1347 = vshrl.u32 %v1346, 7
      %v1348 = vsub.s32 %v1345, %v1347
      %v1349 = vrot.slane %v1335, %v1348
      %v1350 = vcombine.low %v336, %v344
      %v1351 = vcombine.high %v336, %v344
      %v1353 = vunpack.c.l.s4 1983009808
      %v1354 = vunpack.c.0.s8 %v1353
      %v1355 = vlaneseq
      %v1356 = vshrl.u32 %v1355, 7
      %v1357 = vsub.s32 %v1354, %v1356
      %v1358 = vrot.slane %v1350, %v1357
      %v1360 = vunpack.c.l.s4 1983009808
      %v1361 = vunpack.c.0.s8 %v1360
      %v1362 = vlaneseq
      %v1363 = vshrl.u32 %v1362, 7
      %v1364 = vsub.s32 %v1361, %v1363
      %v1365 = vrot.slane %v1351, %v1364
      %v1366 = vcombine.low %v340, %v348
      %v1367 = vcombine.high %v340, %v348
      %v1369 = vunpack.c.l.s4 1983009808
      %v1370 = vunpack.c.0.s8 %v1369
      %v1371 = vlaneseq
      %v1372 = vshrl.u32 %v1371, 7
      %v1373 = vsub.s32 %v1370, %v1372
      %v1374 = vrot.slane %v1366, %v1373
      %v1376 = vunpack.c.l.s4 1983009808
      %v1377 = vunpack.c.0.s8 %v1376
      %v1378 = vlaneseq
      %v1379 = vshrl.u32 %v1378, 7
      %v1380 = vsub.s32 %v1377, %v1379
      %v1381 = vrot.slane %v1367, %v1380
      %v1382 = vcombine.low %v1326, %v1342
      %v1383 = vcombine.high %v1326, %v1342
      %v1385 = vunpack.c.l.s4 1934713408
      %v1386 = vunpack.c.0.s8 %v1385
      %v1387 = vlaneseq
      %v1388 = vshrl.u32 %v1387, 7
      %v1389 = vsub.s32 %v1386, %v1388
      %v1390 = vrot.slane %v1382, %v1389
      %v1392 = vunpack.c.l.s4 1934713408
      %v1393 = vunpack.c.0.s8 %v1392
      %v1394 = vlaneseq
      %v1395 = vshrl.u32 %v1394, 7
      %v1396 = vsub.s32 %v1393, %v1395
      %v1397 = vrot.slane %v1383, %v1396
      %v1398 = vcombine.low %v1333, %v1349
      %v1399 = vcombine.high %v1333, %v1349
      %v1401 = vunpack.c.l.s4 1934713408
      %v1402 = vunpack.c.0.s8 %v1401
      %v1403 = vlaneseq
      %v1404 = vshrl.u32 %v1403, 7
      %v1405 = vsub.s32 %v1402, %v1404
      %v1406 = vrot.slane %v1398, %v1405
      %v1408 = vunpack.c.l.s4 1934713408
      %v1409 = vunpack.c.0.s8 %v1408
      %v1410 = vlaneseq
      %v1411 = vshrl.u32 %v1410, 7
      %v1412 = vsub.s32 %v1409, %v1411
      %v1413 = vrot.slane %v1399, %v1412
      %v1414 = vcombine.low %v1358, %v1374
      %v1415 = vcombine.high %v1358, %v1374
      %v1417 = vunpack.c.l.s4 1934713408
      %v1418 = vunpack.c.0.s8 %v1417
      %v1419 = vlaneseq
      %v1420 = vshrl.u32 %v1419, 7
      %v1421 = vsub.s32 %v1418, %v1420
      %v1422 = vrot.slane %v1414, %v1421
      %v1424 = vunpack.c.l.s4 1934713408
      %v1425 = vunpack.c.0.s8 %v1424
      %v1426 = vlaneseq
      %v1427 = vshrl.u32 %v1426, 7
      %v1428 = vsub.s32 %v1425, %v1427
      %v1429 = vrot.slane %v1415, %v1428
      %v1430 = vcombine.low %v1365, %v1381
      %v1431 = vcombine.high %v1365, %v1381
      %v1433 = vunpack.c.l.s4 1934713408
      %v1434 = vunpack.c.0.s8 %v1433
      %v1435 = vlaneseq
      %v1436 = vshrl.u32 %v1435, 7
      %v1437 = vsub.s32 %v1434, %v1436
      %v1438 = vrot.slane %v1430, %v1437
      %v1440 = vunpack.c.l.s4 1934713408
      %v1441 = vunpack.c.0.s8 %v1440
      %v1442 = vlaneseq
      %v1443 = vshrl.u32 %v1442, 7
      %v1444 = vsub.s32 %v1441, %v1443
      %v1445 = vrot.slane %v1431, %v1444
      %v1446 = vcombine.low %v1390, %v1422
      %v1447 = vcombine.high %v1390, %v1422
      %v1448 = vcombine.low %v1397, %v1429
      %v1449 = vcombine.high %v1397, %v1429
      %v1450 = vcombine.low %v1406, %v1438
      %v1451 = vcombine.high %v1406, %v1438
      %v1452 = vcombine.low %v1413, %v1445
      %v1453 = vcombine.high %v1413, %v1445
      %v1454 = vcombine.low %v362, %v372
      %v1455 = vcombine.high %v362, %v372
      %v1457 = vunpack.c.l.s4 1983009808
      %v1458 = vunpack.c.0.s8 %v1457
      %v1459 = vlaneseq
      %v1460 = vshrl.u32 %v1459, 7
      %v1461 = vsub.s32 %v1458, %v1460
      %v1462 = vrot.slane %v1454, %v1461
      %v1464 = vunpack.c.l.s4 1983009808
      %v1465 = vunpack.c.0.s8 %v1464
      %v1466 = vlaneseq
      %v1467 = vshrl.u32 %v1466, 7
      %v1468 = vsub.s32 %v1465, %v1467
      %v1469 = vrot.slane %v1455, %v1468
      %v1470 = vcombine.low %v367, %v377
      %v1471 = vcombine.high %v367, %v377
      %v1473 = vunpack.c.l.s4 1983009808
      %v1474 = vunpack.c.0.s8 %v1473
      %v1475 = vlaneseq
      %v1476 = vshrl.u32 %v1475, 7
      %v1477 = vsub.s32 %v1474, %v1476
      %v1478 = vrot.slane %v1470, %v1477
      %v1480 = vunpack.c.l.s4 1983009808
      %v1481 = vunpack.c.0.s8 %v1480
      %v1482 = vlaneseq
      %v1483 = vshrl.u32 %v1482, 7
      %v1484 = vsub.s32 %v1481, %v1483
      %v1485 = vrot.slane %v1471, %v1484
      %v1486 = vcombine.low %v389, %v397
      %v1487 = vcombine.high %v389, %v397
      %v1489 = vunpack.c.l.s4 1983009808
      %v1490 = vunpack.c.0.s8 %v1489
      %v1491 = vlaneseq
      %v1492 = vshrl.u32 %v1491, 7
      %v1493 = vsub.s32 %v1490, %v1492
      %v1494 = vrot.slane %v1486, %v1493
      %v1496 = vunpack.c.l.s4 1983009808
      %v1497 = vunpack.c.0.s8 %v1496
      %v1498 = vlaneseq
      %v1499 = vshrl.u32 %v1498, 7
      %v1500 = vsub.s32 %v1497, %v1499
      %v1501 = vrot.slane %v1487, %v1500
      %v1502 = vcombine.low %v393, %v401
      %v1503 = vcombine.high %v393, %v401
      %v1505 = vunpack.c.l.s4 1983009808
      %v1506 = vunpack.c.0.s8 %v1505
      %v1507 = vlaneseq
      %v1508 = vshrl.u32 %v1507, 7
      %v1509 = vsub.s32 %v1506, %v1508
      %v1510 = vrot.slane %v1502, %v1509
      %v1512 = vunpack.c.l.s4 1983009808
      %v1513 = vunpack.c.0.s8 %v1512
      %v1514 = vlaneseq
      %v1515 = vshrl.u32 %v1514, 7
      %v1516 = vsub.s32 %v1513, %v1515
      %v1517 = vrot.slane %v1503, %v1516
      %v1518 = vcombine.low %v1462, %v1478
      %v1519 = vcombine.high %v1462, %v1478
      %v1521 = vunpack.c.l.s4 1934713408
      %v1522 = vunpack.c.0.s8 %v1521
      %v1523 = vlaneseq
      %v1524 = vshrl.u32 %v1523, 7
      %v1525 = vsub.s32 %v1522, %v1524
      %v1526 = vrot.slane %v1518, %v1525
      %v1528 = vunpack.c.l.s4 1934713408
      %v1529 = vunpack.c.0.s8 %v1528
      %v1530 = vlaneseq
      %v1531 = vshrl.u32 %v1530, 7
      %v1532 = vsub.s32 %v1529, %v1531
      %v1533 = vrot.slane %v1519, %v1532
      %v1534 = vcombine.low %v1469, %v1485
      %v1535 = vcombine.high %v1469, %v1485
      %v1537 = vunpack.c.l.s4 1934713408
      %v1538 = vunpack.c.0.s8 %v1537
      %v1539 = vlaneseq
      %v1540 = vshrl.u32 %v1539, 7
      %v1541 = vsub.s32 %v1538, %v1540
      %v1542 = vrot.slane %v1534, %v1541
      %v1544 = vunpack.c.l.s4 1934713408
      %v1545 = vunpack.c.0.s8 %v1544
      %v1546 = vlaneseq
      %v1547 = vshrl.u32 %v1546, 7
      %v1548 = vsub.s32 %v1545, %v1547
      %v1549 = vrot.slane %v1535, %v1548
      %v1550 = vcombine.low %v1494, %v1510
      %v1551 = vcombine.high %v1494, %v1510
      %v1553 = vunpack.c.l.s4 1934713408
      %v1554 = vunpack.c.0.s8 %v1553
      %v1555 = vlaneseq
      %v1556 = vshrl.u32 %v1555, 7
      %v1557 = vsub.s32 %v1554, %v1556
      %v1558 = vrot.slane %v1550, %v1557
      %v1560 = vunpack.c.l.s4 1934713408
      %v1561 = vunpack.c.0.s8 %v1560
      %v1562 = vlaneseq
      %v1563 = vshrl.u32 %v1562, 7
      %v1564 = vsub.s32 %v1561, %v1563
      %v1565 = vrot.slane %v1551, %v1564
      %v1566 = vcombine.low %v1501, %v1517
      %v1567 = vcombine.high %v1501, %v1517
      %v1569 = vunpack.c.l.s4 1934713408
      %v1570 = vunpack.c.0.s8 %v1569
      %v1571 = vlaneseq
      %v1572 = vshrl.u32 %v1571, 7
      %v1573 = vsub.s32 %v1570, %v1572
      %v1574 = vrot.slane %v1566, %v1573
      %v1576 = vunpack.c.l.s4 1934713408
      %v1577 = vunpack.c.0.s8 %v1576
      %v1578 = vlaneseq
      %v1579 = vshrl.u32 %v1578, 7
      %v1580 = vsub.s32 %v1577, %v1579
      %v1581 = vrot.slane %v1567, %v1580
      %v1582 = vcombine.low %v1526, %v1558
      %v1583 = vcombine.high %v1526, %v1558
      %v1584 = vcombine.low %v1533, %v1565
      %v1585 = vcombine.high %v1533, %v1565
      %v1586 = vcombine.low %v1542, %v1574
      %v1587 = vcombine.high %v1542, %v1574
      %v1588 = vcombine.low %v1549, %v1581
      %v1589 = vcombine.high %v1549, %v1581
      %v1590 = vcombine.low %v413, %v421
      %v1591 = vcombine.high %v413, %v421
      %v1593 = vunpack.c.l.s4 1983009808
      %v1594 = vunpack.c.0.s8 %v1593
      %v1595 = vlaneseq
      %v1596 = vshrl.u32 %v1595, 7
      %v1597 = vsub.s32 %v1594, %v1596
      %v1598 = vrot.slane %v1590, %v1597
      %v1600 = vunpack.c.l.s4 1983009808
      %v1601 = vunpack.c.0.s8 %v1600
      %v1602 = vlaneseq
      %v1603 = vshrl.u32 %v1602, 7
      %v1604 = vsub.s32 %v1601, %v1603
      %v1605 = vrot.slane %v1591, %v1604
      %v1606 = vcombine.low %v417, %v425
      %v1607 = vcombine.high %v417, %v425
      %v1609 = vunpack.c.l.s4 1983009808
      %v1610 = vunpack.c.0.s8 %v1609
      %v1611 = vlaneseq
      %v1612 = vshrl.u32 %v1611, 7
      %v1613 = vsub.s32 %v1610, %v1612
      %v1614 = vrot.slane %v1606, %v1613
      %v1616 = vunpack.c.l.s4 1983009808
      %v1617 = vunpack.c.0.s8 %v1616
      %v1618 = vlaneseq
      %v1619 = vshrl.u32 %v1618, 7
      %v1620 = vsub.s32 %v1617, %v1619
      %v1621 = vrot.slane %v1607, %v1620
      %v1622 = vcombine.low %v1598, %v1614
      %v1623 = vcombine.high %v1598, %v1614
      %v1625 = vunpack.c.l.s4 1934713408
      %v1626 = vunpack.c.0.s8 %v1625
      %v1627 = vlaneseq
      %v1628 = vshrl.u32 %v1627, 7
      %v1629 = vsub.s32 %v1626, %v1628
      %v1630 = vrot.slane %v1622, %v1629
      %v1632 = vunpack.c.l.s4 1934713408
      %v1633 = vunpack.c.0.s8 %v1632
      %v1634 = vlaneseq
      %v1635 = vshrl.u32 %v1634, 7
      %v1636 = vsub.s32 %v1633, %v1635
      %v1637 = vrot.slane %v1623, %v1636
      %v1638 = vcombine.low %v1605, %v1621
      %v1639 = vcombine.high %v1605, %v1621
      %v1641 = vunpack.c.l.s4 1934713408
      %v1642 = vunpack.c.0.s8 %v1641
      %v1643 = vlaneseq
      %v1644 = vshrl.u32 %v1643, 7
      %v1645 = vsub.s32 %v1642, %v1644
      %v1646 = vrot.slane %v1638, %v1645
      %v1648 = vunpack.c.l.s4 1934713408
      %v1649 = vunpack.c.0.s8 %v1648
      %v1650 = vlaneseq
      %v1651 = vshrl.u32 %v1650, 7
      %v1652 = vsub.s32 %v1649, %v1651
      %v1653 = vrot.slane %v1639, %v1652
      %v1654 = vcombine.high %v1630, 0.0
      %v1655 = vcombine.high %v1637, 0.0
      %v1656 = vcombine.high %v1646, 0.0
      %v1657 = vcombine.high %v1653, 0.0
      %1663 = vrot.lane.b32.xlu0 %v563, 16
      %v1664 = vpop.permute.xlu0 %1663
      %1665 = vrot.lane.b32.xlu0 %v699, 16
      %v1666 = vpop.permute.xlu0 %1665
      %1667 = vrot.lane.b32.xlu0 %v835, 16
      %v1668 = vpop.permute.xlu0 %1667
      %1669 = vrot.lane.b32.xlu0 %v971, 16
      %v1670 = vpop.permute.xlu0 %1669
      %1671 = vrot.lane.b32.xlu0 %v1042, 16
      %v1672 = vpop.permute.xlu0 %1671
      %1683 = vrot.lane.b32.xlu0 %v564, 32
      %v1684 = vpop.permute.xlu0 %1683
      %1685 = vrot.lane.b32.xlu0 %v700, 32
      %v1686 = vpop.permute.xlu0 %1685
      %1687 = vrot.lane.b32.xlu0 %v836, 32
      %v1688 = vpop.permute.xlu0 %1687
      %1689 = vrot.lane.b32.xlu0 %v972, 32
      %v1690 = vpop.permute.xlu0 %1689
      %1691 = vrot.lane.b32.xlu0 %v1025, 32
      %v1692 = vpop.permute.xlu0 %1691
      %1703 = vrot.lane.b32.xlu0 %v565, 48
      %v1704 = vpop.permute.xlu0 %1703
      %1705 = vrot.lane.b32.xlu0 %v701, 48
      %v1706 = vpop.permute.xlu0 %1705
      %1707 = vrot.lane.b32.xlu0 %v837, 48
      %v1708 = vpop.permute.xlu0 %1707
      %1709 = vrot.lane.b32.xlu0 %v973, 48
      %v1710 = vpop.permute.xlu0 %1709
      %1711 = vrot.lane.b32.xlu0 %v1043, 48
      %v1712 = vpop.permute.xlu0 %1711
      %1723 = vrot.lane.b32.xlu0 %v566, 64
      %v1724 = vpop.permute.xlu0 %1723
      %1725 = vrot.lane.b32.xlu0 %v702, 64
      %v1726 = vpop.permute.xlu0 %1725
      %1727 = vrot.lane.b32.xlu0 %v838, 64
      %v1728 = vpop.permute.xlu0 %1727
      %1729 = vrot.lane.b32.xlu0 %v974, 64
      %v1730 = vpop.permute.xlu0 %1729
      %1731 = vrot.lane.b32.xlu0 %v1034, 64
      %v1732 = vpop.permute.xlu0 %1731
      %1743 = vrot.lane.b32.xlu0 %v567, 80
      %v1744 = vpop.permute.xlu0 %1743
      %1745 = vrot.lane.b32.xlu0 %v703, 80
      %v1746 = vpop.permute.xlu0 %1745
      %1747 = vrot.lane.b32.xlu0 %v839, 80
      %v1748 = vpop.permute.xlu0 %1747
      %1749 = vrot.lane.b32.xlu0 %v975, 80
      %v1750 = vpop.permute.xlu0 %1749
      %1751 = vrot.lane.b32.xlu0 %v1044, 80
      %v1752 = vpop.permute.xlu0 %1751
      %1763 = vrot.lane.b32.xlu0 %v568, 96
      %v1764 = vpop.permute.xlu0 %1763
      %1765 = vrot.lane.b32.xlu0 %v704, 96
      %v1766 = vpop.permute.xlu0 %1765
      %1767 = vrot.lane.b32.xlu0 %v840, 96
      %v1768 = vpop.permute.xlu0 %1767
      %1769 = vrot.lane.b32.xlu0 %v976, 96
      %v1770 = vpop.permute.xlu0 %1769
      %1771 = vrot.lane.b32.xlu0 %v1041, 96
      %v1772 = vpop.permute.xlu0 %1771
      %1783 = vrot.lane.b32.xlu0 %v569, 112
      %v1784 = vpop.permute.xlu0 %1783
      %1785 = vrot.lane.b32.xlu0 %v705, 112
      %v1786 = vpop.permute.xlu0 %1785
      %1787 = vrot.lane.b32.xlu0 %v841, 112
      %v1788 = vpop.permute.xlu0 %1787
      %1789 = vrot.lane.b32.xlu0 %v977, 112
      %v1790 = vpop.permute.xlu0 %1789
      %1791 = vrot.lane.b32.xlu0 %v1045, 112
      %v1792 = vpop.permute.xlu0 %1791
      %1803 = vrot.lane.b32.xlu0 %v1175, 16
      %v1804 = vpop.permute.xlu0 %1803
      %1805 = vrot.lane.b32.xlu0 %v1311, 16
      %v1806 = vpop.permute.xlu0 %1805
      %1807 = vrot.lane.b32.xlu0 %v1447, 16
      %v1808 = vpop.permute.xlu0 %1807
      %1809 = vrot.lane.b32.xlu0 %v1583, 16
      %v1810 = vpop.permute.xlu0 %1809
      %1811 = vrot.lane.b32.xlu0 %v1654, 16
      %v1812 = vpop.permute.xlu0 %1811
      %1823 = vrot.lane.b32.xlu0 %v1176, 32
      %v1824 = vpop.permute.xlu0 %1823
      %1825 = vrot.lane.b32.xlu0 %v1312, 32
      %v1826 = vpop.permute.xlu0 %1825
      %1827 = vrot.lane.b32.xlu0 %v1448, 32
      %v1828 = vpop.permute.xlu0 %1827
      %1829 = vrot.lane.b32.xlu0 %v1584, 32
      %v1830 = vpop.permute.xlu0 %1829
      %1831 = vrot.lane.b32.xlu0 %v1637, 32
      %v1832 = vpop.permute.xlu0 %1831
      %1843 = vrot.lane.b32.xlu0 %v1177, 48
      %v1844 = vpop.permute.xlu0 %1843
      %1845 = vrot.lane.b32.xlu0 %v1313, 48
      %v1846 = vpop.permute.xlu0 %1845
      %1847 = vrot.lane.b32.xlu0 %v1449, 48
      %v1848 = vpop.permute.xlu0 %1847
      %1849 = vrot.lane.b32.xlu0 %v1585, 48
      %v1850 = vpop.permute.xlu0 %1849
      %1851 = vrot.lane.b32.xlu0 %v1655, 48
      %v1852 = vpop.permute.xlu0 %1851
      %1863 = vrot.lane.b32.xlu0 %v1178, 64
      %v1864 = vpop.permute.xlu0 %1863
      %1865 = vrot.lane.b32.xlu0 %v1314, 64
      %v1866 = vpop.permute.xlu0 %1865
      %1867 = vrot.lane.b32.xlu0 %v1450, 64
      %v1868 = vpop.permute.xlu0 %1867
      %1869 = vrot.lane.b32.xlu0 %v1586, 64
      %v1870 = vpop.permute.xlu0 %1869
      %1871 = vrot.lane.b32.xlu0 %v1646, 64
      %v1872 = vpop.permute.xlu0 %1871
      %1883 = vrot.lane.b32.xlu0 %v1179, 80
      %v1884 = vpop.permute.xlu0 %1883
      %1885 = vrot.lane.b32.xlu0 %v1315, 80
      %v1886 = vpop.permute.xlu0 %1885
      %1887 = vrot.lane.b32.xlu0 %v1451, 80
      %v1888 = vpop.permute.xlu0 %1887
      %1889 = vrot.lane.b32.xlu0 %v1587, 80
      %v1890 = vpop.permute.xlu0 %1889
      %1891 = vrot.lane.b32.xlu0 %v1656, 80
      %v1892 = vpop.permute.xlu0 %1891
      %1903 = vrot.lane.b32.xlu0 %v1180, 96
      %v1904 = vpop.permute.xlu0 %1903
      %1905 = vrot.lane.b32.xlu0 %v1316, 96
      %v1906 = vpop.permute.xlu0 %1905
      %1907 = vrot.lane.b32.xlu0 %v1452, 96
      %v1908 = vpop.permute.xlu0 %1907
      %1909 = vrot.lane.b32.xlu0 %v1588, 96
      %v1910 = vpop.permute.xlu0 %1909
      %1911 = vrot.lane.b32.xlu0 %v1653, 96
      %v1912 = vpop.permute.xlu0 %1911
      %1923 = vrot.lane.b32.xlu0 %v1181, 112
      %v1924 = vpop.permute.xlu0 %1923
      %1925 = vrot.lane.b32.xlu0 %v1317, 112
      %v1926 = vpop.permute.xlu0 %1925
      %1927 = vrot.lane.b32.xlu0 %v1453, 112
      %v1928 = vpop.permute.xlu0 %1927
      %1929 = vrot.lane.b32.xlu0 %v1589, 112
      %v1930 = vpop.permute.xlu0 %1929
      %1931 = vrot.lane.b32.xlu0 %v1657, 112
      %v1932 = vpop.permute.xlu0 %1931
      %vm1938 = vcmask 130048
      %v1939 = vsel %vm1938, %v562, %v1664
      %v1940 = vsel %vm1938, %v698, %v1666
      %v1941 = vsel %vm1938, %v834, %v1668
      %v1942 = vsel %vm1938, %v970, %v1670
      %v1943 = vsel %vm1938, %v1018, %v1672
      %vm1944 = vcmask 261120
      %v1945 = vsel %vm1944, %v1939, %v1684
      %v1946 = vsel %vm1944, %v1940, %v1686
      %v1947 = vsel %vm1944, %v1941, %v1688
      %v1948 = vsel %vm1944, %v1942, %v1690
      %v1949 = vsel %vm1944, %v1943, %v1692
      %vm1950 = vcmask 392192
      %v1951 = vsel %vm1950, %v1945, %v1704
      %v1952 = vsel %vm1950, %v1946, %v1706
      %v1953 = vsel %vm1950, %v1947, %v1708
      %v1954 = vsel %vm1950, %v1948, %v1710
      %v1955 = vsel %vm1950, %v1949, %v1712
      %vm1956 = vcmask 523264
      %v1957 = vsel %vm1956, %v1951, %v1724
      %v1958 = vsel %vm1956, %v1952, %v1726
      %v1959 = vsel %vm1956, %v1953, %v1728
      %v1960 = vsel %vm1956, %v1954, %v1730
      %v1961 = vsel %vm1956, %v1955, %v1732
      %vm1962 = vcmask 654336
      %v1963 = vsel %vm1962, %v1957, %v1744
      %v1964 = vsel %vm1962, %v1958, %v1746
      %v1965 = vsel %vm1962, %v1959, %v1748
      %v1966 = vsel %vm1962, %v1960, %v1750
      %v1967 = vsel %vm1962, %v1961, %v1752
      %vm1968 = vcmask 785408
      %v1969 = vsel %vm1968, %v1963, %v1764
      %v1970 = vsel %vm1968, %v1964, %v1766
      %v1971 = vsel %vm1968, %v1965, %v1768
      %v1972 = vsel %vm1968, %v1966, %v1770
      %v1973 = vsel %vm1968, %v1967, %v1772
      %vm1974 = vcmask 916480
      %v1975 = vsel %vm1974, %v1969, %v1784
      %v1976 = vsel %vm1974, %v1970, %v1786
      %v1977 = vsel %vm1974, %v1971, %v1788
      %v1978 = vsel %vm1974, %v1972, %v1790
      %v1979 = vsel %vm1974, %v1973, %v1792
      %v1980 = vsel %vm1938, %v1174, %v1804
      %v1981 = vsel %vm1938, %v1310, %v1806
      %v1982 = vsel %vm1938, %v1446, %v1808
      %v1983 = vsel %vm1938, %v1582, %v1810
      %v1984 = vsel %vm1938, %v1630, %v1812
      %v1985 = vsel %vm1944, %v1980, %v1824
      %v1986 = vsel %vm1944, %v1981, %v1826
      %v1987 = vsel %vm1944, %v1982, %v1828
      %v1988 = vsel %vm1944, %v1983, %v1830
      %v1989 = vsel %vm1944, %v1984, %v1832
      %v1990 = vsel %vm1950, %v1985, %v1844
      %v1991 = vsel %vm1950, %v1986, %v1846
      %v1992 = vsel %vm1950, %v1987, %v1848
      %v1993 = vsel %vm1950, %v1988, %v1850
      %v1994 = vsel %vm1950, %v1989, %v1852
      %v1995 = vsel %vm1956, %v1990, %v1864
      %v1996 = vsel %vm1956, %v1991, %v1866
      %v1997 = vsel %vm1956, %v1992, %v1868
      %v1998 = vsel %vm1956, %v1993, %v1870
      %v1999 = vsel %vm1956, %v1994, %v1872
      %v2000 = vsel %vm1962, %v1995, %v1884
      %v2001 = vsel %vm1962, %v1996, %v1886
      %v2002 = vsel %vm1962, %v1997, %v1888
      %v2003 = vsel %vm1962, %v1998, %v1890
      %v2004 = vsel %vm1962, %v1999, %v1892
      %v2005 = vsel %vm1968, %v2000, %v1904
      %v2006 = vsel %vm1968, %v2001, %v1906
      %v2007 = vsel %vm1968, %v2002, %v1908
      %v2008 = vsel %vm1968, %v2003, %v1910
      %v2009 = vsel %vm1968, %v2004, %v1912
      %v2010 = vsel %vm1974, %v2005, %v1924
      %v2011 = vsel %vm1974, %v2006, %v1926
      %v2012 = vsel %vm1974, %v2007, %v1928
      %v2013 = vsel %vm1974, %v2008, %v1930
      %v2014 = vsel %vm1974, %v2009, %v1932
      %vm2015 = vcmask 293888
      %v2017 = vsel %vm2015, %v207, 0
      %vm2019 = vcmask 1043456
      %v2021 = vsel %vm2019, %v1979, 0
      %v2024 = vsel %vm2019, %v2014, 0
      %2026 = vmatprep.subr.mxu0 %v2010
      %2027 = vmatpush1.msra.mxu0 %v1975
      %2028 = vmatprep.subr.mxu0 %v2011
      %2029 = vmatpush1.msra.mxu0 %v1976
      %2030 = vmatprep.subr.mxu0 %v2012
      %2031 = vmatpush1.msra.mxu0 %v1977
      %2032 = vmatprep.subr.mxu0 %v2013
      %2033 = vmatpush1.msra.mxu0 %v1978
      %2034 = vmatprep.subr.mxu0 %v2024
      %2035 = vmatpush1.msra.mxu0 %v2021
      %2036 = vmatprep.subr.mxu0 0.0
      %2037 = vmatpush1.msra.mxu0 0.0
      %2038 = vmatprep.subr.mxu0 0.0
      %2039 = vmatpush1.msra.mxu0 0.0
      %2040 = vmatprep.subr.mxu0 0.0
      %2041 = vmatpush1.msra.mxu0 0.0
      %2042 = vmatprep.subr.mxu0 0.0
      %2043 = vmatpush1.msra.mxu0 0.0
      %2044 = vmatprep.subr.mxu0 0.0
      %2045 = vmatpush1.msra.mxu0 0.0
      %2046 = vmatprep.subr.mxu0 0.0
      %2047 = vmatpush1.msra.mxu0 0.0
      %2048 = vmatprep.subr.mxu0 0.0
      %2049 = vmatpush1.msra.mxu0 0.0
      %2050 = vmatprep.subr.mxu0 0.0
      %2051 = vmatpush1.msra.mxu0 0.0
      %2052 = vmatprep.subr.mxu0 0.0
      %2053 = vmatpush1.msra.mxu0 0.0
      %2054 = vmatprep.subr.mxu0 0.0
      %2055 = vmatpush1.msra.mxu0 0.0
      %2056 = vmatprep.subr.mxu0 0.0
      %2057 = vmatpush1.msra.mxu0 0.0
      %2058 = vmatprep.subr.mxu0 0.0
      %2059 = vmatpush1.msra.mxu0 0.0
      %2060 = vmatprep.subr.mxu0 0.0
      %2061 = vmatpush1.msra.mxu0 0.0
      %2062 = vmatprep.subr.mxu0 0.0
      %2063 = vmatpush1.msra.mxu0 0.0
      %2064 = vmatprep.subr.mxu0 0.0
      %2065 = vmatpush1.msra.mxu0 0.0
      %2066 = vmatprep.subr.mxu0 0.0
      %2067 = vmatpush1.msra.mxu0 0.0
      %2068 = vmatprep.subr.mxu0 0.0
      %2069 = vmatpush1.msra.mxu0 0.0
      %2070 = vmatprep.subr.mxu0 0.0
      %2071 = vmatpush1.msra.mxu0 0.0
      %2072 = vmatprep.subr.mxu0 0.0
      %2073 = vmatpush1.msra.mxu0 0.0
      %2074 = vmatprep.subr.mxu0 0.0
      %2075 = vmatpush1.msra.mxu0 0.0
      %2076 = vmatprep.subr.mxu0 0.0
      %2077 = vmatpush1.msra.mxu0 0.0
      %2078 = vmatprep.subr.mxu0 0.0
      %2079 = vmatpush1.msra.mxu0 0.0
      %2080 = vmatprep.subr.mxu0 0.0
      %2081 = vmatpush1.msra.mxu0 0.0
      %2082 = vmatprep.subr.mxu0 0.0
      %2083 = vmatpush1.msra.mxu0 0.0
      %2084 = vmatprep.subr.mxu0 0.0
      %2085 = vmatpush1.msra.mxu0 0.0
      %2086 = vmatprep.subr.mxu0 0.0
      %2087 = vmatpush1.msra.mxu0 0.0
      %2088 = vmatprep.subr.mxu0 0.0
      %2089 = vmatpush1.msra.mxu0 0.0
      %2090 = vmatprep.mubr.f32.mxu0 0.0
      %2091 = vmatmul.mubr.f32.gmra.mrb[0].mxu0 %v2017
      %v2092 = vpop.f32.mrb[0].mxu0
      %v2093 = vadd.f32 0.0, %v2092
      %v2094 = vpop.f32.mrb[0].mxu0
      %v2095 = vadd.f32 0.0, %v2094
      %2096 = vdwg.mxu0
      %2097 = vst [vmem:[%s143] sm:$0xff] %v2093
      %2098 = vst [vmem:[%s143 + $0x8] sm:$0xff] %v2095
      %p2099 = scmp.lt.s32.totalorder %s13, 1
      %s2100 = scalar_select %p2099, %s13, 1
      %s2101 = smul.addr %s2100, 2
      %s2102 = smul.addr %s2101, 8
      %s2103 = scalar_lea.vmem %s2, %s2102
      // Predicated region
      $region29: #{separable_conv2d.1} parent=27 // pred_check
        %p2104 = pneg %p78
      $region30: #{separable_conv2d.1} parent=27 // pred_check_branch
        %2106 = sbr.rel (%p2104) target = $region32
      $region31: #{separable_conv2d.1} parent=27 // pred_region
        _
      $region32: #{separable_conv2d.1} parent=27 // pred_fallthru
        _
    $region28: #{separable_conv2d.1} parent=5 // pred_fallthru
      _
    %p2107 = scmp.le.s32.totalorder 2, %s8
    // Predicated region
    $region33: #{separable_conv2d.1} parent=5 // pred_check
      %p2108 = pneg %p2107
    $region34: #{separable_conv2d.1} parent=5 // pred_check_branch
      %2110 = sbr.rel (%p2108) target = $region36
    $region35: #{separable_conv2d.1} parent=5 // pred_region
      %s2111 = ssub.s32 %s8, 2
      // Predicated region
      $region37: #{separable_conv2d.1} parent=35 // pred_check
        %p2112 = pneg %p84
      $region38: #{separable_conv2d.1} parent=35 // pred_check_branch
        %2114 = sbr.rel (%p2112) target = $region40
      $region39: #{separable_conv2d.1} parent=35 // pred_region
        %p2115 = scmp.lt.s32.totalorder %s14, 1
        %s2116 = scalar_select %p2115, %s14, 1
        %s2117 = smul.addr %s2116, 2
        %s2118 = smul.addr %s2117, 8
        %s2119 = scalar_lea.vmem %s2, %s2118
      $region40: #{separable_conv2d.1} parent=35 // pred_fallthru
        _
    $region36: #{separable_conv2d.1} parent=5 // pred_fallthru
      _
  $region6: #{separable_conv2d.1} parent=0 // loop_footer
    %s12 = sadd.s32 1, %s8
  $region7: #{separable_conv2d.1} parent=0 // loop_footer_branch
    %7 = sbr.rel target = $region3
  $region8: #{separable_conv2d.1} parent=0 // loop_exit
    _

</llo_original>
